<compile_context>
chip_gen: v7x
topology: tpu7x:2x2x1
jax: 0.10.0
libtpu: 0.0.40
codegen_flags: <defaults>
</compile_context>

<pallas_src>
import jax
import jax.numpy as jnp
from jax.experimental import pallas as pl
from jax.experimental.pallas import tpu as pltpu

# ---- problem sizes consistent with InnerModel(mean, scale, inputs, outputs) ----
B = 256                                                  # demo batch rows (2 grid steps)
HIDDEN = 256                                             # fixed to 256 in the module
INPUTS = (("QT", 16), ("SLI", 16), ("SST", 1), ("SOLIN", 1))   # (name, num_features)
OUTPUTS = (("QT", 16), ("SLI", 16))
D_IN = sum(n for _, n in INPUTS)                         # 34
D_OUT = sum(n for _, n in OUTPUTS)                       # 32
D_IN_PAD = 128                                           # lane-dense input block
D_OUT_PAD = 128                                          # lane-dense output block


def inner_model_kernel(x_ref, w_in_ref, b_in_ref, w1_ref, b1_ref,
                       w2_ref, b2_ref, w_out_ref, b_out_ref, o_ref):
    # All matmuls: bf16 MXU inputs, f32 accumulation.  Biases are f32 and added
    # after accumulation.  Scaler and the QT clamp are pre-folded into the
    # first / last weights, so the kernel is pure matmul + ReLU.
    h = jnp.dot(x_ref[...], w_in_ref[...],
                preferred_element_type=jnp.float32) + b_in_ref[...]
    h = jnp.maximum(h, 0.0).astype(jnp.bfloat16)

    h = jnp.dot(h, w1_ref[...],
                preferred_element_type=jnp.float32) + b1_ref[...]
    h = jnp.maximum(h, 0.0).astype(jnp.bfloat16)

    h = jnp.dot(h, w2_ref[...],
                preferred_element_type=jnp.float32) + b2_ref[...]
    h = jnp.maximum(h, 0.0).astype(jnp.bfloat16)

    y = jnp.dot(h, w_out_ref[...],
                preferred_element_type=jnp.float32) + b_out_ref[...]
    o_ref[...] = y.astype(o_ref.dtype)                   # full 128-lane unmasked store


def inner_model_forward(x, p, *, batch_tile=128):
    """Wrapper: fold Scaler + QT clamp into weights, pad to lane-dense blocks,
    run one fused batch-tiled kernel, and split the output back into a dict."""
    # ---- concatenate dict inputs along lanes ----
    x_cat = jnp.concatenate([x[k] for k, _ in INPUTS], axis=1)            # [B, 34]
    nb = x_cat.shape[0]

    mean_cat = jnp.concatenate([p["mean"][k] for k, _ in INPUTS])         # [34]
    scale_cat = jnp.concatenate([p["scale"][k] for k, _ in INPUTS])       # [34]
    inv_scale = 1.0 / scale_cat

    # ---- fold Scaler into the first linear:  ((x-mean)/scale)@W = x@W' + b' ----
    w_in = jnp.concatenate([p["w_in"][k] for k, _ in INPUTS], axis=0)     # [34, 256]
    w_in_f = inv_scale[:, None] * w_in
    b_in_f = p["b_in"] - (mean_cat * inv_scale) @ w_in                    # [256]

    # ---- fold the QT clamp into the output linear ----
    w_out = jnp.concatenate([p["w_out"][k] for k, _ in OUTPUTS], axis=1)  # [256, 32]
    b_out = jnp.concatenate([p["b_out"][k] for k, _ in OUTPUTS])          # [32]
    mult_parts = []
    for name, n in OUTPUTS:
        if name == "QT":
            mult_parts.append(jnp.minimum(p["scale"]["QT"], 1.0))         # clamp(max=1)
        else:
            mult_parts.append(jnp.ones((n,), jnp.float32))
    out_mult = jnp.concatenate(mult_parts)                                # [32]
    w_out_f = w_out * out_mult[None, :]
    b_out_f = b_out * out_mult

    # ---- lane-dense zero padding: 34 -> 128 input lanes, 32 -> 128 output lanes ----
    w_in_pad = jnp.zeros((D_IN_PAD, HIDDEN), jnp.float32).at[:D_IN].set(w_in_f)
    w_out_pad = jnp.zeros((HIDDEN, D_OUT_PAD), jnp.float32).at[:, :D_OUT].set(w_out_f)
    b_out_pad = jnp.zeros((D_OUT_PAD,), jnp.float32).at[:D_OUT].set(b_out_f)

    # ---- pad the batch to a multiple of the tile (no assert; padded rows dropped) ----
    nb_pad = ((nb + batch_tile - 1) // batch_tile) * batch_tile
    x_pad = jnp.zeros((nb_pad, D_IN_PAD), jnp.bfloat16)
    x_pad = x_pad.at[:nb, :D_IN].set(x_cat.astype(jnp.bfloat16))

    # ---- bf16 MXU operands (weights); biases stay f32, added post-accumulation ----
    w_in_b = w_in_pad.astype(jnp.bfloat16)
    w1_b = p["w1"].astype(jnp.bfloat16)
    w2_b = p["w2"].astype(jnp.bfloat16)
    w_out_b = w_out_pad.astype(jnp.bfloat16)
    b_in_2d = b_in_f[None, :]
    b1_2d = p["b1"][None, :]
    b2_2d = p["b2"][None, :]
    b_out_2d = b_out_pad[None, :]

    inv = lambda i: (0, 0)   # grid-invariant blocks: weights resident across the batch axis

    y_pad = pl.pallas_call(
        inner_model_kernel,
        out_shape=jax.ShapeDtypeStruct((nb_pad, D_OUT_PAD), jnp.float32),
        grid_spec=pltpu.PrefetchScalarGridSpec(
            num_scalar_prefetch=0,
            grid=(nb_pad // batch_tile,),
            in_specs=[
                pl.BlockSpec((batch_tile, D_IN_PAD), lambda i: (i, 0)),  # x (batch-tiled)
                pl.BlockSpec((D_IN_PAD, HIDDEN), inv),                   # W_in  [128, 256]
                pl.BlockSpec((1, HIDDEN), inv),                          # b_in
                pl.BlockSpec((HIDDEN, HIDDEN), inv),                     # W1    [256, 256]
                pl.BlockSpec((1, HIDDEN), inv),                          # b1
                pl.BlockSpec((HIDDEN, HIDDEN), inv),                     # W2    [256, 256]
                pl.BlockSpec((1, HIDDEN), inv),                          # b2
                pl.BlockSpec((HIDDEN, D_OUT_PAD), inv),                  # W_out [256, 128]
                pl.BlockSpec((1, D_OUT_PAD), inv),                       # b_out
            ],
            out_specs=pl.BlockSpec((batch_tile, D_OUT_PAD), lambda i: (i, 0)),
        ),
        compiler_params=pltpu.CompilerParams(
            dimension_semantics=("parallel",),      # batch axis -> megacore on v7x
            vmem_limit_bytes=64 << 20,              # headroom if batch_tile grows (v5e)
        ),
    )(x_pad, w_in_b, b_in_2d, w1_b, b1_2d, w2_b, b2_2d, w_out_b, b_out_2d)

    # Drop batch/lane padding and split back into the dict the module returns.
    y_cat = y_pad[:nb, :D_OUT]
    y, off = {}, 0
    for name, n in OUTPUTS:
        y[name] = y_cat[:, off:off + n]
        off += n
    return y


def inner_model_reference(x, p):
    """Pure-JAX f32 reference mirroring the PyTorch module key-by-key."""
    xs = {k: (x[k] - p["mean"][k]) / p["scale"][k] for k, _ in INPUTS}       # Scaler
    h = sum(xs[k] @ p["w_in"][k] for k, _ in INPUTS) + p["b_in"]             # LinearDictIn
    h = jnp.maximum(h, 0.0)
    h = jnp.maximum(h @ p["w1"] + p["b1"], 0.0)
    h = jnp.maximum(h @ p["w2"] + p["b2"], 0.0)
    y = {k: h @ p["w_out"][k] + p["b_out"][k] for k, _ in OUTPUTS}           # LinearDictOut
    q0 = jnp.minimum(p["scale"]["QT"], 1.0)                                  # clamp(max=1)
    y["QT"] = y["QT"] * q0
    return y


def init_params(key):
    """Deterministic init. Weights stored as [in_features, out_features]."""
    ks = iter(jax.random.split(key, 32))

    def uni(k, shape, bound):
        return jax.random.uniform(k, shape, jnp.float32, -bound, bound)

    mean = {name: 0.1 * jax.random.normal(next(ks), (n,), jnp.float32) for name, n in INPUTS}
    scale = {name: jax.random.uniform(next(ks), (n,), jnp.float32, 0.5, 2.0) for name, n in INPUTS}

    b_in_bound = 1.0 / jnp.sqrt(jnp.float32(D_IN))
    w_in = {name: uni(next(ks), (n, HIDDEN), b_in_bound) for name, n in INPUTS}
    b_in = uni(next(ks), (HIDDEN,), b_in_bound)

    b_h = 1.0 / jnp.sqrt(jnp.float32(HIDDEN))
    w1, b1 = uni(next(ks), (HIDDEN, HIDDEN), b_h), uni(next(ks), (HIDDEN,), b_h)
    w2, b2 = uni(next(ks), (HIDDEN, HIDDEN), b_h), uni(next(ks), (HIDDEN,), b_h)

    w_out = {name: uni(next(ks), (HIDDEN, n), b_h) for name, n in OUTPUTS}
    b_out = {name: uni(next(ks), (n,), b_h) for name, n in OUTPUTS}

    return dict(mean=mean, scale=scale, w_in=w_in, b_in=b_in,
                w1=w1, b1=b1, w2=w2, b2=b2, w_out=w_out, b_out=b_out)


if __name__ == "__main__":
    key = jax.random.PRNGKey(0)
    kx, kp = jax.random.split(key)
    xkeys = jax.random.split(kx, len(INPUTS))
    x = {name: jax.random.normal(k, (B, n), jnp.float32)
         for (name, n), k in zip(INPUTS, xkeys)}
    params = init_params(kp)

    out = inner_model_forward(x, params)
    out = {k: jax.block_until_ready(v) for k, v in out.items()}

    ref = inner_model_reference(x, params)
    for name, n in OUTPUTS:
        assert out[name].shape == (B, n)
        # bf16 MXU inputs (f32 accumulation) => relaxed tolerance vs. the f32 reference.
        assert jnp.allclose(out[name], ref[name], atol=3e-2, rtol=3e-2), f"mismatch in {name}"
    print("KERNEL_OK")
</pallas_src>

<mosaic_0001>
module attributes {stable_mosaic.version = 11 : i64} {
  func.func @inner_model_kernel(%arg0: i32, %arg1: memref<128x128xbf16, #tpu.memory_space<vmem>>, %arg2: memref<128x256xbf16, #tpu.memory_space<vmem>>, %arg3: memref<1x256xf32, #tpu.memory_space<vmem>>, %arg4: memref<256x256xbf16, #tpu.memory_space<vmem>>, %arg5: memref<1x256xf32, #tpu.memory_space<vmem>>, %arg6: memref<256x256xbf16, #tpu.memory_space<vmem>>, %arg7: memref<1x256xf32, #tpu.memory_space<vmem>>, %arg8: memref<256x128xbf16, #tpu.memory_space<vmem>>, %arg9: memref<1x128xf32, #tpu.memory_space<vmem>>, %arg10: memref<128x128xf32, #tpu.memory_space<vmem>>) attributes {dimension_semantics = [#tpu.dimension_semantics<parallel>], iteration_bounds = array<i64: 2>, scalar_prefetch = 0 : i64, scratch_operands = 0 : i64, tpu.core_type = #tpu.core_type<tc>, window_params = [{transform_indices = @transform_0, window_bounds = array<i64: 128, 128>}, {pipeline_mode = #tpu.pipeline_mode<synchronous>, transform_indices = @transform_1, window_bounds = array<i64: 128, 256>}, {pipeline_mode = #tpu.pipeline_mode<synchronous>, transform_indices = @transform_2, window_bounds = array<i64: 1, 256>}, {pipeline_mode = #tpu.pipeline_mode<synchronous>, transform_indices = @transform_3, window_bounds = array<i64: 256, 256>}, {pipeline_mode = #tpu.pipeline_mode<synchronous>, transform_indices = @transform_4, window_bounds = array<i64: 1, 256>}, {pipeline_mode = #tpu.pipeline_mode<synchronous>, transform_indices = @transform_5, window_bounds = array<i64: 256, 256>}, {pipeline_mode = #tpu.pipeline_mode<synchronous>, transform_indices = @transform_6, window_bounds = array<i64: 1, 256>}, {pipeline_mode = #tpu.pipeline_mode<synchronous>, transform_indices = @transform_7, window_bounds = array<i64: 256, 128>}, {pipeline_mode = #tpu.pipeline_mode<synchronous>, transform_indices = @transform_8, window_bounds = array<i64: 1, 128>}, {transform_indices = @transform_9, window_bounds = array<i64: 128, 128>}]} {
    %c0 = arith.constant 0 : index
    %c0_0 = arith.constant 0 : index
    %0 = vector.load %arg1[%c0, %c0_0] : memref<128x128xbf16, #tpu.memory_space<vmem>>, vector<128x128xbf16>
    %c0_1 = arith.constant 0 : index
    %c0_2 = arith.constant 0 : index
    %1 = vector.load %arg2[%c0_1, %c0_2] : memref<128x256xbf16, #tpu.memory_space<vmem>>, vector<128x256xbf16>
    %cst = arith.constant dense<0.000000e+00> : vector<128x256xf32>
    %2 = tpu.matmul %0, %1, %cst {dimension_numbers = #tpu.dot_dimension_numbers<[1], [0], [0], [1], [0, 0, 1, 1], [], []>} : vector<128x128xbf16>, vector<128x256xbf16>, vector<128x256xf32> -> vector<128x256xf32>
    %c0_3 = arith.constant 0 : index
    %c0_4 = arith.constant 0 : index
    %3 = vector.load %arg3[%c0_3, %c0_4] : memref<1x256xf32, #tpu.memory_space<vmem>>, vector<1x256xf32>
    %4 = vector.broadcast %3 : vector<1x256xf32> to vector<128x256xf32>
    %5 = arith.addf %2, %4 : vector<128x256xf32>
    %cst_5 = arith.constant 0.000000e+00 : f32
    %6 = vector.broadcast %cst_5 : f32 to vector<128x256xf32>
    %7 = arith.maximumf %5, %6 : vector<128x256xf32>
    %8 = arith.truncf %7 : vector<128x256xf32> to vector<128x256xbf16>
    %c0_6 = arith.constant 0 : index
    %c0_7 = arith.constant 0 : index
    %9 = vector.load %arg4[%c0_6, %c0_7] : memref<256x256xbf16, #tpu.memory_space<vmem>>, vector<256x256xbf16>
    %cst_8 = arith.constant dense<0.000000e+00> : vector<128x256xf32>
    %10 = tpu.matmul %8, %9, %cst_8 {dimension_numbers = #tpu.dot_dimension_numbers<[1], [0], [0], [1], [0, 0, 1, 1], [], []>} : vector<128x256xbf16>, vector<256x256xbf16>, vector<128x256xf32> -> vector<128x256xf32>
    %c0_9 = arith.constant 0 : index
    %c0_10 = arith.constant 0 : index
    %11 = vector.load %arg5[%c0_9, %c0_10] : memref<1x256xf32, #tpu.memory_space<vmem>>, vector<1x256xf32>
    %12 = vector.broadcast %11 : vector<1x256xf32> to vector<128x256xf32>
    %13 = arith.addf %10, %12 : vector<128x256xf32>
    %cst_11 = arith.constant 0.000000e+00 : f32
    %14 = vector.broadcast %cst_11 : f32 to vector<128x256xf32>
    %15 = arith.maximumf %13, %14 : vector<128x256xf32>
    %16 = arith.truncf %15 : vector<128x256xf32> to vector<128x256xbf16>
    %c0_12 = arith.constant 0 : index
    %c0_13 = arith.constant 0 : index
    %17 = vector.load %arg6[%c0_12, %c0_13] : memref<256x256xbf16, #tpu.memory_space<vmem>>, vector<256x256xbf16>
    %cst_14 = arith.constant dense<0.000000e+00> : vector<128x256xf32>
    %18 = tpu.matmul %16, %17, %cst_14 {dimension_numbers = #tpu.dot_dimension_numbers<[1], [0], [0], [1], [0, 0, 1, 1], [], []>} : vector<128x256xbf16>, vector<256x256xbf16>, vector<128x256xf32> -> vector<128x256xf32>
    %c0_15 = arith.constant 0 : index
    %c0_16 = arith.constant 0 : index
    %19 = vector.load %arg7[%c0_15, %c0_16] : memref<1x256xf32, #tpu.memory_space<vmem>>, vector<1x256xf32>
    %20 = vector.broadcast %19 : vector<1x256xf32> to vector<128x256xf32>
    %21 = arith.addf %18, %20 : vector<128x256xf32>
    %cst_17 = arith.constant 0.000000e+00 : f32
    %22 = vector.broadcast %cst_17 : f32 to vector<128x256xf32>
    %23 = arith.maximumf %21, %22 : vector<128x256xf32>
    %24 = arith.truncf %23 : vector<128x256xf32> to vector<128x256xbf16>
    %c0_18 = arith.constant 0 : index
    %c0_19 = arith.constant 0 : index
    %25 = vector.load %arg8[%c0_18, %c0_19] : memref<256x128xbf16, #tpu.memory_space<vmem>>, vector<256x128xbf16>
    %cst_20 = arith.constant dense<0.000000e+00> : vector<128x128xf32>
    %26 = tpu.matmul %24, %25, %cst_20 {dimension_numbers = #tpu.dot_dimension_numbers<[1], [0], [0], [1], [0, 0, 1, 1], [], []>} : vector<128x256xbf16>, vector<256x128xbf16>, vector<128x128xf32> -> vector<128x128xf32>
    %c0_21 = arith.constant 0 : index
    %c0_22 = arith.constant 0 : index
    %27 = vector.load %arg9[%c0_21, %c0_22] : memref<1x128xf32, #tpu.memory_space<vmem>>, vector<1x128xf32>
    %28 = vector.broadcast %27 : vector<1x128xf32> to vector<128x128xf32>
    %29 = arith.addf %26, %28 : vector<128x128xf32>
    %c0_23 = arith.constant 0 : index
    %c0_24 = arith.constant 0 : index
    %30 = vector.load %arg10[%c0_23, %c0_24] : memref<128x128xf32, #tpu.memory_space<vmem>>, vector<128x128xf32>
    tpu.vector_store %arg10[%c0_23, %c0_24], %29 {strides = array<i32>} : memref<128x128xf32, #tpu.memory_space<vmem>>, vector<128x128xf32>,
    return
  }
  func.func @transform_0(%arg0: i32) -> (i32, i32) {
    %c0_i32 = arith.constant 0 : i32
    %c0_i32_0 = arith.constant 0 : i32
    return %arg0, %c0_i32 : i32, i32
  }
  func.func @transform_1(%arg0: i32) -> (i32, i32) {
    %c0_i32 = arith.constant 0 : i32
    %c0_i32_0 = arith.constant 0 : i32
    %c0_i32_1 = arith.constant 0 : i32
    return %c0_i32, %c0_i32_0 : i32, i32
  }
  func.func @transform_2(%arg0: i32) -> (i32, i32) {
    %c0_i32 = arith.constant 0 : i32
    %c0_i32_0 = arith.constant 0 : i32
    %c0_i32_1 = arith.constant 0 : i32
    return %c0_i32, %c0_i32_0 : i32, i32
  }
  func.func @transform_3(%arg0: i32) -> (i32, i32) {
    %c0_i32 = arith.constant 0 : i32
    %c0_i32_0 = arith.constant 0 : i32
    %c0_i32_1 = arith.constant 0 : i32
    return %c0_i32, %c0_i32_0 : i32, i32
  }
  func.func @transform_4(%arg0: i32) -> (i32, i32) {
    %c0_i32 = arith.constant 0 : i32
    %c0_i32_0 = arith.constant 0 : i32
    %c0_i32_1 = arith.constant 0 : i32
    return %c0_i32, %c0_i32_0 : i32, i32
  }
  func.func @transform_5(%arg0: i32) -> (i32, i32) {
    %c0_i32 = arith.constant 0 : i32
    %c0_i32_0 = arith.constant 0 : i32
    %c0_i32_1 = arith.constant 0 : i32
    return %c0_i32, %c0_i32_0 : i32, i32
  }
  func.func @transform_6(%arg0: i32) -> (i32, i32) {
    %c0_i32 = arith.constant 0 : i32
    %c0_i32_0 = arith.constant 0 : i32
    %c0_i32_1 = arith.constant 0 : i32
    return %c0_i32, %c0_i32_0 : i32, i32
  }
  func.func @transform_7(%arg0: i32) -> (i32, i32) {
    %c0_i32 = arith.constant 0 : i32
    %c0_i32_0 = arith.constant 0 : i32
    %c0_i32_1 = arith.constant 0 : i32
    return %c0_i32, %c0_i32_0 : i32, i32
  }
  func.func @transform_8(%arg0: i32) -> (i32, i32) {
    %c0_i32 = arith.constant 0 : i32
    %c0_i32_0 = arith.constant 0 : i32
    %c0_i32_1 = arith.constant 0 : i32
    return %c0_i32, %c0_i32_0 : i32, i32
  }
  func.func @transform_9(%arg0: i32) -> (i32, i32) {
    %c0_i32 = arith.constant 0 : i32
    %c0_i32_0 = arith.constant 0 : i32
    return %arg0, %c0_i32 : i32, i32
  }
}

</mosaic_0001>

<llo_original>
// kernel: tpu_custom_call.1
$region0: #{tpu_custom_call.1}
  #allocation0 [shape = 'u32[]', space=smem, size = 0x4, offset = 0x4, fixed_abs, tag = 'smem constant byte address 0x4 - core index']
  #allocation1 [shape = 'u32[144,128]{1,0:T(1,128)}', space=vmem, size = 0x12000, scoped, tag = 'internal scratch']
  %s0 = inlined_call_operand.hbm [shape: bf16[256,128], index: 0, kind: input, shape index: {}]
  %s1 = inlined_call_operand.hbm [shape: bf16[128,256], index: 1, kind: input, shape index: {}]
  %s2 = inlined_call_operand.hbm [shape: f32[1,256], index: 2, kind: input, shape index: {}]
  %s3 = inlined_call_operand.hbm [shape: bf16[256,256], index: 3, kind: input, shape index: {}]
  %s4 = inlined_call_operand.hbm [shape: f32[1,256], index: 4, kind: input, shape index: {}]
  %s5 = inlined_call_operand.hbm [shape: bf16[256,256], index: 5, kind: input, shape index: {}]
  %s6 = inlined_call_operand.hbm [shape: f32[1,256], index: 6, kind: input, shape index: {}]
  %s7 = inlined_call_operand.hbm [shape: bf16[256,128], index: 7, kind: input, shape index: {}]
  %s8 = inlined_call_operand.hbm [shape: f32[1,128], index: 8, kind: input, shape index: {}]
  %s9 = inlined_call_operand.hbm [shape: f32[256,128], index: 9, kind: output, shape index: {}]
  %s10 = sld [smem:[#allocation0]]
  $region105: #{tpu_custom_call.1} parent=0
    _
  %s12 = ssub.s32 1, %s10
  %s13 = scalar_select 0, %s12, %s10
  $region1: #{tpu_custom_call.1} parent=0
    #allocation2 [shape = 'u8[65536]{0}', space=vmem, size = 0x10000, scoped, tag = 'input window, operand 0']
    #allocation3 [shape = 's32[2]{0}', space=sflag, size = 0x8, scoped, tag = 'scoped memory for tpu_custom_call.1']
    #allocation4 [shape = 's32[2]{0}', space=sflag, size = 0x8, scoped, tag = 'scoped memory for tpu_custom_call.1']
    #allocation5 [shape = 'u8[65536]{0}', space=vmem, size = 0x10000, scoped, tag = 'input window, operand 1, single buffered']
    #allocation6 [shape = 's32[1]{0}', space=sflag, size = 0x4, scoped, tag = 'scoped memory for tpu_custom_call.1']
    #allocation7 [shape = 'u8[1024]{0}', space=vmem, size = 0x400, scoped, tag = 'input window, operand 2, single buffered']
    #allocation8 [shape = 'u8[131072]{0}', space=vmem, size = 0x20000, scoped, tag = 'input window, operand 3, single buffered']
    #allocation9 [shape = 's32[1]{0}', space=sflag, size = 0x4, scoped, tag = 'scoped memory for tpu_custom_call.1']
    #allocation10 [shape = 'u8[1024]{0}', space=vmem, size = 0x400, scoped, tag = 'input window, operand 4, single buffered']
    #allocation11 [shape = 'u8[131072]{0}', space=vmem, size = 0x20000, scoped, tag = 'input window, operand 5, single buffered']
    #allocation12 [shape = 's32[1]{0}', space=sflag, size = 0x4, scoped, tag = 'scoped memory for tpu_custom_call.1']
    #allocation13 [shape = 'u8[1024]{0}', space=vmem, size = 0x400, scoped, tag = 'input window, operand 6, single buffered']
    #allocation14 [shape = 'u8[65536]{0}', space=vmem, size = 0x10000, scoped, tag = 'input window, operand 7, single buffered']
    #allocation15 [shape = 's32[1]{0}', space=sflag, size = 0x4, scoped, tag = 'scoped memory for tpu_custom_call.1']
    #allocation16 [shape = 'u8[512]{0}', space=vmem, size = 0x400, scoped, tag = 'input window, operand 8, single buffered']
    #allocation17 [shape = 'u8[131072]{0}', space=vmem, size = 0x20000, scoped, tag = 'output window, operand 0']
    %14 = vsyncpa [#allocation3], 0
    %s15 = scalar_lea.sflag [#allocation3], 1
    %16 = vsyncpa %s15, 0
    %17 = vsyncpa [#allocation6], 0
    %18 = vsyncpa [#allocation9], 0
    %19 = vsyncpa [#allocation12], 0
    %20 = vsyncpa [#allocation15], 0
    %21 = vsyncpa [#allocation4], 0
    %s22 = scalar_lea.sflag [#allocation4], 1
    %23 = vsyncpa %s22, 0
    loop: start=0, step=1, limit=4
    $region2: #{tpu_custom_call.1} parent=1 // loop_pre_header
      _
    $region3: #{tpu_custom_call.1} parent=1 // loop_header
      %s25 = sphi 0, %s29
      %p26 = scmp.ge.s32.totalorder %s25, 4
      %s35 = sphi 0, %s37
      %s38 = sphi 0, %s35
      %s39 = sphi 0, %s38
      %s55 = sphi 0, %s39
      %s59 = sphi 0, %s59
      %s61 = sphi 0, %s59
      %s62 = sphi 0, %s61
      %s76 = sphi 0, %s62
      %s80 = sphi 0, %s80
      %s82 = sphi 0, %s80
      %s83 = sphi 0, %s82
      %s97 = sphi 0, %s83
      %s101 = sphi 0, %s101
      %s103 = sphi 0, %s101
      %s104 = sphi 0, %s103
      %s118 = sphi 0, %s104
      %s122 = sphi 0, %s122
      %s124 = sphi 0, %s122
      %s125 = sphi 0, %s124
      %s139 = sphi 0, %s125
      %s143 = sphi 0, %s143
      %s145 = sphi 0, %s143
      %s146 = sphi 0, %s145
      %s160 = sphi 0, %s146
      %s164 = sphi 0, %s164
      %s166 = sphi 0, %s164
      %s167 = sphi 0, %s166
      %s181 = sphi 0, %s167
      %s185 = sphi 0, %s185
      %s187 = sphi 0, %s185
      %s188 = sphi 0, %s187
      %s202 = sphi 0, %s188
      %s206 = sphi 0, %s206
      %s208 = sphi 0, %s206
      %s209 = sphi 0, %s208
      %s223 = sphi 0, %s209
      %s229 = sphi 0, %s231
      %s232 = sphi 0, %s229
      %s233 = sphi 0, %s232
      %s249 = sphi 0, %s233
    $region4: #{tpu_custom_call.1} parent=1 // loop_header_branch
      %28 = sbr.rel (%p26) target = $region8
    $region5: #{tpu_custom_call.1} parent=1 // loop_body
      %s30 = ssub.s32 %s25, 1
      %s31 = ssub.s32 %s25, 2
      %s32 = sadd.s32 %s25, 1
      %s33 = ssub.s32 %s25, %s32
      %p34 = scmp.eq.s32.totalorder %s33, 0
      %s36 = sadd.s32 %s35, 1
      %s37 = scalar_select %p34, %s35, %s36
      %p40 = pneg %p34
      %p41 = scmp.eq.s32.totalorder %s25, 1
      %p42 = por %p40, %p41
      %p43 = scmp.ne.s32.totalorder %s35, %s38
      %p44 = scmp.eq.s32.totalorder %s25, 0
      %p45 = por %p43, %p44
      %p46 = scmp.ne.s32.totalorder %s35, %s38
      %p47 = scmp.eq.s32.totalorder %s30, 1
      %p48 = por %p46, %p47
      %p49 = scmp.ne.s32.totalorder %s38, %s39
      %p50 = scmp.eq.s32.totalorder %s30, 0
      %p51 = por %p49, %p50
      %p52 = scmp.ne.s32.totalorder %s38, %s39
      %p53 = scmp.eq.s32.totalorder %s31, 1
      %p54 = por %p52, %p53
      %p56 = scmp.ne.s32.totalorder %s39, %s55
      %p57 = scmp.eq.s32.totalorder %s31, 0
      %p58 = por %p56, %p57
      %s60 = sadd.s32 %s59, 1
      %p63 = scmp.eq.s32.totalorder %s25, 1
      %p64 = scmp.ne.s32.totalorder %s59, %s61
      %p65 = scmp.eq.s32.totalorder %s25, 0
      %p66 = por %p64, %p65
      %p67 = scmp.ne.s32.totalorder %s59, %s61
      %p68 = scmp.eq.s32.totalorder %s30, 1
      %p69 = por %p67, %p68
      %p70 = scmp.ne.s32.totalorder %s61, %s62
      %p71 = scmp.eq.s32.totalorder %s30, 0
      %p72 = por %p70, %p71
      %p73 = scmp.ne.s32.totalorder %s61, %s62
      %p74 = scmp.eq.s32.totalorder %s31, 1
      %p75 = por %p73, %p74
      %p77 = scmp.ne.s32.totalorder %s62, %s76
      %p78 = scmp.eq.s32.totalorder %s31, 0
      %p79 = por %p77, %p78
      %s81 = sadd.s32 %s80, 1
      %p84 = scmp.eq.s32.totalorder %s25, 1
      %p85 = scmp.ne.s32.totalorder %s80, %s82
      %p86 = scmp.eq.s32.totalorder %s25, 0
      %p87 = por %p85, %p86
      %p88 = scmp.ne.s32.totalorder %s80, %s82
      %p89 = scmp.eq.s32.totalorder %s30, 1
      %p90 = por %p88, %p89
      %p91 = scmp.ne.s32.totalorder %s82, %s83
      %p92 = scmp.eq.s32.totalorder %s30, 0
      %p93 = por %p91, %p92
      %p94 = scmp.ne.s32.totalorder %s82, %s83
      %p95 = scmp.eq.s32.totalorder %s31, 1
      %p96 = por %p94, %p95
      %p98 = scmp.ne.s32.totalorder %s83, %s97
      %p99 = scmp.eq.s32.totalorder %s31, 0
      %p100 = por %p98, %p99
      %s102 = sadd.s32 %s101, 1
      %p105 = scmp.eq.s32.totalorder %s25, 1
      %p106 = scmp.ne.s32.totalorder %s101, %s103
      %p107 = scmp.eq.s32.totalorder %s25, 0
      %p108 = por %p106, %p107
      %p109 = scmp.ne.s32.totalorder %s101, %s103
      %p110 = scmp.eq.s32.totalorder %s30, 1
      %p111 = por %p109, %p110
      %p112 = scmp.ne.s32.totalorder %s103, %s104
      %p113 = scmp.eq.s32.totalorder %s30, 0
      %p114 = por %p112, %p113
      %p115 = scmp.ne.s32.totalorder %s103, %s104
      %p116 = scmp.eq.s32.totalorder %s31, 1
      %p117 = por %p115, %p116
      %p119 = scmp.ne.s32.totalorder %s104, %s118
      %p120 = scmp.eq.s32.totalorder %s31, 0
      %p121 = por %p119, %p120
      %s123 = sadd.s32 %s122, 1
      %p126 = scmp.eq.s32.totalorder %s25, 1
      %p127 = scmp.ne.s32.totalorder %s122, %s124
      %p128 = scmp.eq.s32.totalorder %s25, 0
      %p129 = por %p127, %p128
      %p130 = scmp.ne.s32.totalorder %s122, %s124
      %p131 = scmp.eq.s32.totalorder %s30, 1
      %p132 = por %p130, %p131
      %p133 = scmp.ne.s32.totalorder %s124, %s125
      %p134 = scmp.eq.s32.totalorder %s30, 0
      %p135 = por %p133, %p134
      %p136 = scmp.ne.s32.totalorder %s124, %s125
      %p137 = scmp.eq.s32.totalorder %s31, 1
      %p138 = por %p136, %p137
      %p140 = scmp.ne.s32.totalorder %s125, %s139
      %p141 = scmp.eq.s32.totalorder %s31, 0
      %p142 = por %p140, %p141
      %s144 = sadd.s32 %s143, 1
      %p147 = scmp.eq.s32.totalorder %s25, 1
      %p148 = scmp.ne.s32.totalorder %s143, %s145
      %p149 = scmp.eq.s32.totalorder %s25, 0
      %p150 = por %p148, %p149
      %p151 = scmp.ne.s32.totalorder %s143, %s145
      %p152 = scmp.eq.s32.totalorder %s30, 1
      %p153 = por %p151, %p152
      %p154 = scmp.ne.s32.totalorder %s145, %s146
      %p155 = scmp.eq.s32.totalorder %s30, 0
      %p156 = por %p154, %p155
      %p157 = scmp.ne.s32.totalorder %s145, %s146
      %p158 = scmp.eq.s32.totalorder %s31, 1
      %p159 = por %p157, %p158
      %p161 = scmp.ne.s32.totalorder %s146, %s160
      %p162 = scmp.eq.s32.totalorder %s31, 0
      %p163 = por %p161, %p162
      %s165 = sadd.s32 %s164, 1
      %p168 = scmp.eq.s32.totalorder %s25, 1
      %p169 = scmp.ne.s32.totalorder %s164, %s166
      %p170 = scmp.eq.s32.totalorder %s25, 0
      %p171 = por %p169, %p170
      %p172 = scmp.ne.s32.totalorder %s164, %s166
      %p173 = scmp.eq.s32.totalorder %s30, 1
      %p174 = por %p172, %p173
      %p175 = scmp.ne.s32.totalorder %s166, %s167
      %p176 = scmp.eq.s32.totalorder %s30, 0
      %p177 = por %p175, %p176
      %p178 = scmp.ne.s32.totalorder %s166, %s167
      %p179 = scmp.eq.s32.totalorder %s31, 1
      %p180 = por %p178, %p179
      %p182 = scmp.ne.s32.totalorder %s167, %s181
      %p183 = scmp.eq.s32.totalorder %s31, 0
      %p184 = por %p182, %p183
      %s186 = sadd.s32 %s185, 1
      %p189 = scmp.eq.s32.totalorder %s25, 1
      %p190 = scmp.ne.s32.totalorder %s185, %s187
      %p191 = scmp.eq.s32.totalorder %s25, 0
      %p192 = por %p190, %p191
      %p193 = scmp.ne.s32.totalorder %s185, %s187
      %p194 = scmp.eq.s32.totalorder %s30, 1
      %p195 = por %p193, %p194
      %p196 = scmp.ne.s32.totalorder %s187, %s188
      %p197 = scmp.eq.s32.totalorder %s30, 0
      %p198 = por %p196, %p197
      %p199 = scmp.ne.s32.totalorder %s187, %s188
      %p200 = scmp.eq.s32.totalorder %s31, 1
      %p201 = por %p199, %p200
      %p203 = scmp.ne.s32.totalorder %s188, %s202
      %p204 = scmp.eq.s32.totalorder %s31, 0
      %p205 = por %p203, %p204
      %s207 = sadd.s32 %s206, 1
      %p210 = scmp.eq.s32.totalorder %s25, 1
      %p211 = scmp.ne.s32.totalorder %s206, %s208
      %p212 = scmp.eq.s32.totalorder %s25, 0
      %p213 = por %p211, %p212
      %p214 = scmp.ne.s32.totalorder %s206, %s208
      %p215 = scmp.eq.s32.totalorder %s30, 1
      %p216 = por %p214, %p215
      %p217 = scmp.ne.s32.totalorder %s208, %s209
      %p218 = scmp.eq.s32.totalorder %s30, 0
      %p219 = por %p217, %p218
      %p220 = scmp.ne.s32.totalorder %s208, %s209
      %p221 = scmp.eq.s32.totalorder %s31, 1
      %p222 = por %p220, %p221
      %p224 = scmp.ne.s32.totalorder %s209, %s223
      %p225 = scmp.eq.s32.totalorder %s31, 0
      %p226 = por %p224, %p225
      %s227 = ssub.s32 %s25, %s32
      %p228 = scmp.eq.s32.totalorder %s227, 0
      %s230 = sadd.s32 %s229, 1
      %s231 = scalar_select %p228, %s229, %s230
      %p234 = pneg %p228
      %p235 = scmp.eq.s32.totalorder %s25, 1
      %p236 = por %p234, %p235
      %p237 = scmp.ne.s32.totalorder %s229, %s232
      %p238 = scmp.eq.s32.totalorder %s25, 0
      %p239 = por %p237, %p238
      %p240 = scmp.ne.s32.totalorder %s229, %s232
      %p241 = scmp.eq.s32.totalorder %s30, 1
      %p242 = por %p240, %p241
      %p243 = scmp.ne.s32.totalorder %s232, %s233
      %p244 = scmp.eq.s32.totalorder %s30, 0
      %p245 = por %p243, %p244
      %p246 = scmp.ne.s32.totalorder %s232, %s233
      %p247 = scmp.eq.s32.totalorder %s31, 1
      %p248 = por %p246, %p247
      %p250 = scmp.ne.s32.totalorder %s233, %s249
      %p251 = scmp.eq.s32.totalorder %s31, 0
      %p252 = por %p250, %p251
      %p253 = scmp.le.s32.totalorder 1, %s25
      %p254 = scmp.lt.s32.totalorder %s25, 3
      %p255 = pnand %p253, %p254
      %p256 = pneg %p255
      // Predicated region
      $region9: #{tpu_custom_call.1} parent=5 // pred_check
        _
      $region10: #{tpu_custom_call.1} parent=5 // pred_check_branch
        %258 = sbr.rel (%p255) target = $region12
      $region11: #{tpu_custom_call.1} parent=5 // pred_region
        %s259 = ssub.s32 %s25, 1
        // Predicated region
        $region13: #{tpu_custom_call.1} parent=11 // pred_check
          %p260 = pneg %p72
        $region14: #{tpu_custom_call.1} parent=11 // pred_check_branch
          %262 = sbr.rel (%p260) target = $region16
        $region15: #{tpu_custom_call.1} parent=11 // pred_region
          %s264 = ssub.s32 2048, 2048
          %265 = vsyncadd [#allocation6], %s264
          %s266 = sshll.u32 [#allocation5], 4
          %s267 = int_to_ptr.vmem [resolvable:$true] %s266
          %272 = dma.hbm_to_vmem [thread:$0]  %s1, 2048, %s267, [#allocation6], 128, 128, 8
        $region16: #{tpu_custom_call.1} parent=11 // pred_fallthru
          _
        // Predicated region
        $region17: #{tpu_custom_call.1} parent=11 // pred_check
          %p273 = pneg %p93
        $region18: #{tpu_custom_call.1} parent=11 // pred_check_branch
          %275 = sbr.rel (%p273) target = $region20
        $region19: #{tpu_custom_call.1} parent=11 // pred_region
          %s277 = ssub.s32 32, 32
          %278 = vsyncadd [#allocation6], %s277
          %s280 = sshll.u32 [#allocation7], 4
          %s281 = int_to_ptr.vmem [resolvable:$true] %s280
          %283 = dma.hbm_to_vmem [thread:$0]  %s2, 32, %s281, [#allocation6]
        $region20: #{tpu_custom_call.1} parent=11 // pred_fallthru
          _
        // Predicated region
        $region21: #{tpu_custom_call.1} parent=11 // pred_check
          %p284 = pneg %p114
        $region22: #{tpu_custom_call.1} parent=11 // pred_check_branch
          %286 = sbr.rel (%p284) target = $region24
        $region23: #{tpu_custom_call.1} parent=11 // pred_region
          %s288 = ssub.s32 4096, 4096
          %289 = vsyncadd [#allocation9], %s288
          %s290 = sshll.u32 [#allocation8], 4
          %s291 = int_to_ptr.vmem [resolvable:$true] %s290
          %296 = dma.hbm_to_vmem [thread:$0]  %s3, 4096, %s291, [#allocation9], 128, 128, 8
        $region24: #{tpu_custom_call.1} parent=11 // pred_fallthru
          _
        // Predicated region
        $region25: #{tpu_custom_call.1} parent=11 // pred_check
          %p297 = pneg %p135
        $region26: #{tpu_custom_call.1} parent=11 // pred_check_branch
          %299 = sbr.rel (%p297) target = $region28
        $region27: #{tpu_custom_call.1} parent=11 // pred_region
          %s301 = ssub.s32 32, 32
          %302 = vsyncadd [#allocation9], %s301
          %s304 = sshll.u32 [#allocation10], 4
          %s305 = int_to_ptr.vmem [resolvable:$true] %s304
          %307 = dma.hbm_to_vmem [thread:$0]  %s4, 32, %s305, [#allocation9]
        $region28: #{tpu_custom_call.1} parent=11 // pred_fallthru
          _
        // Predicated region
        $region29: #{tpu_custom_call.1} parent=11 // pred_check
          %p308 = pneg %p156
        $region30: #{tpu_custom_call.1} parent=11 // pred_check_branch
          %310 = sbr.rel (%p308) target = $region32
        $region31: #{tpu_custom_call.1} parent=11 // pred_region
          %s312 = ssub.s32 4096, 4096
          %313 = vsyncadd [#allocation12], %s312
          %s314 = sshll.u32 [#allocation11], 4
          %s315 = int_to_ptr.vmem [resolvable:$true] %s314
          %320 = dma.hbm_to_vmem [thread:$0]  %s5, 4096, %s315, [#allocation12], 128, 128, 8
        $region32: #{tpu_custom_call.1} parent=11 // pred_fallthru
          _
        // Predicated region
        $region33: #{tpu_custom_call.1} parent=11 // pred_check
          %p321 = pneg %p177
        $region34: #{tpu_custom_call.1} parent=11 // pred_check_branch
          %323 = sbr.rel (%p321) target = $region36
        $region35: #{tpu_custom_call.1} parent=11 // pred_region
          %s325 = ssub.s32 32, 32
          %326 = vsyncadd [#allocation12], %s325
          %s328 = sshll.u32 [#allocation13], 4
          %s329 = int_to_ptr.vmem [resolvable:$true] %s328
          %331 = dma.hbm_to_vmem [thread:$0]  %s6, 32, %s329, [#allocation12]
        $region36: #{tpu_custom_call.1} parent=11 // pred_fallthru
          _
        // Predicated region
        $region37: #{tpu_custom_call.1} parent=11 // pred_check
          %p332 = pneg %p198
        $region38: #{tpu_custom_call.1} parent=11 // pred_check_branch
          %334 = sbr.rel (%p332) target = $region40
        $region39: #{tpu_custom_call.1} parent=11 // pred_region
          %s336 = ssub.s32 2048, 2048
          %337 = vsyncadd [#allocation15], %s336
          %s338 = sshll.u32 [#allocation14], 4
          %s339 = int_to_ptr.vmem [resolvable:$true] %s338
          %344 = dma.hbm_to_vmem [thread:$0]  %s7, 2048, %s339, [#allocation15], 64, 64, 4
        $region40: #{tpu_custom_call.1} parent=11 // pred_fallthru
          _
        // Predicated region
        $region41: #{tpu_custom_call.1} parent=11 // pred_check
          %p345 = pneg %p219
        $region42: #{tpu_custom_call.1} parent=11 // pred_check_branch
          %347 = sbr.rel (%p345) target = $region44
        $region43: #{tpu_custom_call.1} parent=11 // pred_region
          %s349 = ssub.s32 16, 16
          %350 = vsyncadd [#allocation15], %s349
          %s352 = sshll.u32 [#allocation16], 4
          %s353 = int_to_ptr.vmem [resolvable:$true] %s352
          %355 = dma.hbm_to_vmem [thread:$0]  %s8, 16, %s353, [#allocation15]
        $region44: #{tpu_custom_call.1} parent=11 // pred_fallthru
          _
      $region12: #{tpu_custom_call.1} parent=5 // pred_fallthru
        _
      %p356 = scmp.lt.s32.totalorder %s25, 2
      // Predicated region
      $region45: #{tpu_custom_call.1} parent=5 // pred_check
        %p357 = pneg %p356
      $region46: #{tpu_custom_call.1} parent=5 // pred_check_branch
        %359 = sbr.rel (%p357) target = $region48
      $region47: #{tpu_custom_call.1} parent=5 // pred_region
        // Predicated region
        $region49: #{tpu_custom_call.1} parent=47 // pred_check
          %p360 = pneg %p45
        $region50: #{tpu_custom_call.1} parent=47 // pred_check_branch
          %362 = sbr.rel (%p360) target = $region52
        $region51: #{tpu_custom_call.1} parent=47 // pred_region
          %s363 = sand.u32 %s35, 1
          %s364 = scalar_lea.sflag [#allocation3], %s363
          %s365 = sand.u32 %s35, 1
          %s366 = smul.addr %s365, 64
          %s367 = scalar_lea.vmem [#allocation2], %s366
          %s368 = smul.u32 16, %s25
          %s370 = ssub.s32 1024, 1024
          %371 = vsyncadd %s364, %s370
          %s372 = smul.addr %s368, 64
          %s373 = scalar_lea.hbm %s0, %s372
          %s374 = sshll.u32 %s367, 4
          %s375 = int_to_ptr.vmem [resolvable:$true] %s374
          %380 = dma.hbm_to_vmem [thread:$0]  %s373, 1024, %s375, %s364, 64, 64, 4
        $region52: #{tpu_custom_call.1} parent=47 // pred_fallthru
          _
      $region48: #{tpu_custom_call.1} parent=5 // pred_fallthru
        _
      %p381 = scmp.le.s32.totalorder 1, %s25
      %p382 = scmp.lt.s32.totalorder %s25, 3
      %p383 = pnand %p381, %p382
      %p384 = pneg %p383
      // Predicated region
      $region53: #{tpu_custom_call.1} parent=5 // pred_check
        _
      $region54: #{tpu_custom_call.1} parent=5 // pred_check_branch
        %386 = sbr.rel (%p383) target = $region56
      $region55: #{tpu_custom_call.1} parent=5 // pred_region
        %s387 = ssub.s32 %s25, 1
        %s388 = sand.u32 %s38, 1
        %s389 = scalar_lea.sflag [#allocation3], %s388
        %s390 = sand.u32 %s38, 1
        %s391 = smul.addr %s390, 64
        %s392 = scalar_lea.vmem [#allocation2], %s391
        // Predicated region
        $region57: #{tpu_custom_call.1} parent=55 // pred_check
          %p393 = pneg %p51
        $region58: #{tpu_custom_call.1} parent=55 // pred_check_branch
          %395 = sbr.rel (%p393) target = $region60
        $region59: #{tpu_custom_call.1} parent=55 // pred_region
          %396 = dma.done %s389, 1024
        $region60: #{tpu_custom_call.1} parent=55 // pred_fallthru
          _
        // Predicated region
        $region61: #{tpu_custom_call.1} parent=55 // pred_check
          %p397 = pneg %p72
        $region62: #{tpu_custom_call.1} parent=55 // pred_check_branch
          %399 = sbr.rel (%p397) target = $region64
        $region63: #{tpu_custom_call.1} parent=55 // pred_region
          %400 = dma.done [#allocation6], 2048
        $region64: #{tpu_custom_call.1} parent=55 // pred_fallthru
          _
        // Predicated region
        $region65: #{tpu_custom_call.1} parent=55 // pred_check
          %p401 = pneg %p93
        $region66: #{tpu_custom_call.1} parent=55 // pred_check_branch
          %403 = sbr.rel (%p401) target = $region68
        $region67: #{tpu_custom_call.1} parent=55 // pred_region
          %404 = dma.done [#allocation6], 32
        $region68: #{tpu_custom_call.1} parent=55 // pred_fallthru
          _
        // Predicated region
        $region69: #{tpu_custom_call.1} parent=55 // pred_check
          %p405 = pneg %p114
        $region70: #{tpu_custom_call.1} parent=55 // pred_check_branch
          %407 = sbr.rel (%p405) target = $region72
        $region71: #{tpu_custom_call.1} parent=55 // pred_region
          %408 = dma.done [#allocation9], 4096
        $region72: #{tpu_custom_call.1} parent=55 // pred_fallthru
          _
        // Predicated region
        $region73: #{tpu_custom_call.1} parent=55 // pred_check
          %p409 = pneg %p135
        $region74: #{tpu_custom_call.1} parent=55 // pred_check_branch
          %411 = sbr.rel (%p409) target = $region76
        $region75: #{tpu_custom_call.1} parent=55 // pred_region
          %412 = dma.done [#allocation9], 32
        $region76: #{tpu_custom_call.1} parent=55 // pred_fallthru
          _
        // Predicated region
        $region77: #{tpu_custom_call.1} parent=55 // pred_check
          %p413 = pneg %p156
        $region78: #{tpu_custom_call.1} parent=55 // pred_check_branch
          %415 = sbr.rel (%p413) target = $region80
        $region79: #{tpu_custom_call.1} parent=55 // pred_region
          %416 = dma.done [#allocation12], 4096
        $region80: #{tpu_custom_call.1} parent=55 // pred_fallthru
          _
        // Predicated region
        $region81: #{tpu_custom_call.1} parent=55 // pred_check
          %p417 = pneg %p177
        $region82: #{tpu_custom_call.1} parent=55 // pred_check_branch
          %419 = sbr.rel (%p417) target = $region84
        $region83: #{tpu_custom_call.1} parent=55 // pred_region
          %420 = dma.done [#allocation12], 32
        $region84: #{tpu_custom_call.1} parent=55 // pred_fallthru
          _
        // Predicated region
        $region85: #{tpu_custom_call.1} parent=55 // pred_check
          %p421 = pneg %p198
        $region86: #{tpu_custom_call.1} parent=55 // pred_check_branch
          %423 = sbr.rel (%p421) target = $region88
        $region87: #{tpu_custom_call.1} parent=55 // pred_region
          %424 = dma.done [#allocation15], 2048
        $region88: #{tpu_custom_call.1} parent=55 // pred_fallthru
          _
        // Predicated region
        $region89: #{tpu_custom_call.1} parent=55 // pred_check
          %p425 = pneg %p219
        $region90: #{tpu_custom_call.1} parent=55 // pred_check_branch
          %427 = sbr.rel (%p425) target = $region92
        $region91: #{tpu_custom_call.1} parent=55 // pred_region
          %428 = dma.done [#allocation15], 16
        $region92: #{tpu_custom_call.1} parent=55 // pred_fallthru
          _
        %s429 = sand.u32 %s38, 1
        %s430 = scalar_lea.sflag [#allocation3], %s429
        %s431 = sand.u32 %s38, 1
        %s432 = smul.addr %s431, 64
        %s433 = scalar_lea.vmem [#allocation2], %s432
        %p434 = pneg %p51
        %p435 = pneg %p48
        %p436 = pneg %p72
        %p437 = pneg %p69
        %p438 = pneg %p93
        %p439 = pneg %p90
        %p440 = pneg %p114
        %p441 = pneg %p111
        %p442 = pneg %p135
        %p443 = pneg %p132
        %p444 = pneg %p156
        %p445 = pneg %p153
        %p446 = pneg %p177
        %p447 = pneg %p174
        %p448 = pneg %p198
        %p449 = pneg %p195
        %p450 = pneg %p219
        %p451 = pneg %p216
        %p452 = pneg %p245
        %p453 = pneg %p242
        %s454 = sand.u32 %s232, 1
        %s455 = scalar_lea.sflag [#allocation4], %s454
        %s456 = sand.u32 %s232, 1
        %s457 = smul.addr %s456, 128
        %s458 = scalar_lea.vmem [#allocation17], %s457
        %s459 = smul.u32 16, %s30
        %s460 = smul.u32 16, %s30
        %v462 = vld [vmem:[%s392] sm:$0xf]
        %v463 = vld [vmem:[%s392 + $0x4] sm:$0xf]
        %v464 = vld [vmem:[%s392 + $0x8] sm:$0xf]
        %v465 = vld [vmem:[%s392 + $0xc] sm:$0xf]
        %v466 = vld [vmem:[%s392 + $0x10] sm:$0xf]
        %v467 = vld [vmem:[%s392 + $0x14] sm:$0xf]
        %v468 = vld [vmem:[%s392 + $0x18] sm:$0xf]
        %v469 = vld [vmem:[%s392 + $0x1c] sm:$0xf]
        %v470 = vld [vmem:[%s392 + $0x20] sm:$0xf]
        %v471 = vld [vmem:[%s392 + $0x24] sm:$0xf]
        %v472 = vld [vmem:[%s392 + $0x28] sm:$0xf]
        %v473 = vld [vmem:[%s392 + $0x2c] sm:$0xf]
        %v474 = vld [vmem:[%s392 + $0x30] sm:$0xf]
        %v475 = vld [vmem:[%s392 + $0x34] sm:$0xf]
        %v476 = vld [vmem:[%s392 + $0x38] sm:$0xf]
        %v477 = vld [vmem:[%s392 + $0x3c] sm:$0xf]
        %v478 = vld [vmem:[#allocation5] sm:$0xff]
        %v479 = vld [vmem:[#allocation5 + $0x8] sm:$0xff]
        %v480 = vld [vmem:[#allocation5 + $0x10] sm:$0xff]
        %v481 = vld [vmem:[#allocation5 + $0x18] sm:$0xff]
        %v482 = vld [vmem:[#allocation5 + $0x20] sm:$0xff]
        %v483 = vld [vmem:[#allocation5 + $0x28] sm:$0xff]
        %v484 = vld [vmem:[#allocation5 + $0x30] sm:$0xff]
        %v485 = vld [vmem:[#allocation5 + $0x38] sm:$0xff]
        %v486 = vld [vmem:[#allocation5 + $0x40] sm:$0xff]
        %v487 = vld [vmem:[#allocation5 + $0x48] sm:$0xff]
        %v488 = vld [vmem:[#allocation5 + $0x50] sm:$0xff]
        %v489 = vld [vmem:[#allocation5 + $0x58] sm:$0xff]
        %v490 = vld [vmem:[#allocation5 + $0x60] sm:$0xff]
        %v491 = vld [vmem:[#allocation5 + $0x68] sm:$0xff]
        %v492 = vld [vmem:[#allocation5 + $0x70] sm:$0xff]
        %v493 = vld [vmem:[#allocation5 + $0x78] sm:$0xff]
        %v494 = vld [vmem:[#allocation7] sm:$0x3]
        %v496 = vlaneseq
        %v497 = vshrl.u32 %v496, 7
        %v498 = vsub.s32 0, %v497
        %v499 = vrot.slane %v494, %v498
        %v500 = vlaneseq
        %v501 = vshrl.u32 %v500, 7
        %v502 = vsub.s32 1, %v501
        %v503 = vrot.slane %v494, %v502
        %v522 = vunpack.c.l.b16 %v462
        %v523 = vunpack.c.l.b16 %v463
        %v524 = vunpack.c.l.b16 %v464
        %v525 = vunpack.c.l.b16 %v465
        %v526 = vunpack.c.l.b16 %v466
        %v527 = vunpack.c.l.b16 %v467
        %v528 = vunpack.c.l.b16 %v468
        %v529 = vunpack.c.l.b16 %v469
        %v530 = vunpack.c.l.b16 %v470
        %v531 = vunpack.c.l.b16 %v471
        %v532 = vunpack.c.l.b16 %v472
        %v533 = vunpack.c.l.b16 %v473
        %v534 = vunpack.c.l.b16 %v474
        %v535 = vunpack.c.l.b16 %v475
        %v536 = vunpack.c.l.b16 %v476
        %v537 = vunpack.c.l.b16 %v477
        %v538 = vpack.c.b16 %v523, %v522
        %v539 = vpack.c.b16 %v525, %v524
        %v540 = vpack.c.b16 %v527, %v526
        %v541 = vpack.c.b16 %v529, %v528
        %v542 = vpack.c.b16 %v531, %v530
        %v543 = vpack.c.b16 %v533, %v532
        %v544 = vpack.c.b16 %v535, %v534
        %v545 = vpack.c.b16 %v537, %v536
        %v570 = vunpack.c.l.b16 %v478
        %v571 = vunpack.c.h.b16 %v478
        %v572 = vunpack.c.l.b16 %v479
        %v573 = vunpack.c.h.b16 %v479
        %v574 = vunpack.c.l.b16 %v480
        %v575 = vunpack.c.h.b16 %v480
        %v576 = vunpack.c.l.b16 %v481
        %v577 = vunpack.c.h.b16 %v481
        %v578 = vunpack.c.l.b16 %v482
        %v579 = vunpack.c.h.b16 %v482
        %v580 = vunpack.c.l.b16 %v483
        %v581 = vunpack.c.h.b16 %v483
        %v582 = vunpack.c.l.b16 %v484
        %v583 = vunpack.c.h.b16 %v484
        %v584 = vunpack.c.l.b16 %v485
        %v585 = vunpack.c.h.b16 %v485
        %v586 = vunpack.c.l.b16 %v486
        %v587 = vunpack.c.h.b16 %v486
        %v588 = vunpack.c.l.b16 %v487
        %v589 = vunpack.c.h.b16 %v487
        %v590 = vunpack.c.l.b16 %v488
        %v591 = vunpack.c.h.b16 %v488
        %v592 = vunpack.c.l.b16 %v489
        %v593 = vunpack.c.h.b16 %v489
        %v594 = vunpack.c.l.b16 %v490
        %v595 = vunpack.c.h.b16 %v490
        %v596 = vunpack.c.l.b16 %v491
        %v597 = vunpack.c.h.b16 %v491
        %v598 = vunpack.c.l.b16 %v492
        %v599 = vunpack.c.h.b16 %v492
        %v600 = vunpack.c.l.b16 %v493
        %v601 = vunpack.c.h.b16 %v493
        %v602 = vpack.c.b16 %v572, %v570
        %v603 = vpack.c.b16 %v573, %v571
        %v604 = vpack.c.b16 %v576, %v574
        %v605 = vpack.c.b16 %v577, %v575
        %v606 = vpack.c.b16 %v580, %v578
        %v607 = vpack.c.b16 %v581, %v579
        %v608 = vpack.c.b16 %v584, %v582
        %v609 = vpack.c.b16 %v585, %v583
        %v610 = vpack.c.b16 %v588, %v586
        %v611 = vpack.c.b16 %v589, %v587
        %v612 = vpack.c.b16 %v592, %v590
        %v613 = vpack.c.b16 %v593, %v591
        %v614 = vpack.c.b16 %v596, %v594
        %v615 = vpack.c.b16 %v597, %v595
        %v616 = vpack.c.b16 %v600, %v598
        %v617 = vpack.c.b16 %v601, %v599
        %634 = vmatprep.subr.bf16.mxu0 %v603
        %635 = vmatpush1.bf16.msra.mxu0 %v602
        %636 = vmatprep.subr.bf16.mxu0 %v605
        %637 = vmatpush1.bf16.msra.mxu0 %v604
        %638 = vmatprep.subr.bf16.mxu0 %v607
        %639 = vmatpush1.bf16.msra.mxu0 %v606
        %640 = vmatprep.subr.bf16.mxu0 %v609
        %641 = vmatpush1.bf16.msra.mxu0 %v608
        %642 = vmatprep.subr.bf16.mxu0 %v611
        %643 = vmatpush1.bf16.msra.mxu0 %v610
        %644 = vmatprep.subr.bf16.mxu0 %v613
        %645 = vmatpush1.bf16.msra.mxu0 %v612
        %646 = vmatprep.subr.bf16.mxu0 %v615
        %647 = vmatpush1.bf16.msra.mxu0 %v614
        %648 = vmatprep.subr.bf16.mxu0 %v617
        %649 = vmatpush1.bf16.msra.mxu0 %v616
        %650 = vmatprep.subr.bf16.mxu0 0
        %651 = vmatpush1.bf16.msra.mxu0 0
        %652 = vmatprep.subr.bf16.mxu0 0
        %653 = vmatpush1.bf16.msra.mxu0 0
        %654 = vmatprep.subr.bf16.mxu0 0
        %655 = vmatpush1.bf16.msra.mxu0 0
        %656 = vmatprep.subr.bf16.mxu0 0
        %657 = vmatpush1.bf16.msra.mxu0 0
        %658 = vmatprep.subr.bf16.mxu0 0
        %659 = vmatpush1.bf16.msra.mxu0 0
        %660 = vmatprep.subr.bf16.mxu0 0
        %661 = vmatpush1.bf16.msra.mxu0 0
        %662 = vmatprep.subr.bf16.mxu0 0
        %663 = vmatpush1.bf16.msra.mxu0 0
        %664 = vmatprep.subr.bf16.mxu0 0
        %665 = vmatpush1.bf16.msra.mxu0 0
        %666 = vmatprep.mubr.bf16.mxu0 0
        %667 = vmatmul.mubr.bf16.gmra.mrb[0].mxu0 %v538
        %v668 = vpop.f32.mrb[0].mxu0
        %v669 = vadd.f32 %v499, %v668
        %v670 = vpop.f32.mrb[0].mxu0
        %v671 = vadd.f32 %v503, %v670
        %v672 = vpop.f32.mrb[0].mxu0
        %v673 = vadd.f32 %v499, %v672
        %v674 = vpop.f32.mrb[0].mxu0
        %v675 = vadd.f32 %v503, %v674
        %676 = vmatprep.mubr.bf16.mxu0 0
        %677 = vmatmul.mubr.bf16.gmra.mrb[0].mxu0 %v539
        %v678 = vpop.f32.mrb[0].mxu0
        %v679 = vadd.f32 %v499, %v678
        %v680 = vpop.f32.mrb[0].mxu0
        %v681 = vadd.f32 %v503, %v680
        %v682 = vpop.f32.mrb[0].mxu0
        %v683 = vadd.f32 %v499, %v682
        %v684 = vpop.f32.mrb[0].mxu0
        %v685 = vadd.f32 %v503, %v684
        %686 = vmatprep.mubr.bf16.mxu0 0
        %687 = vmatmul.mubr.bf16.gmra.mrb[0].mxu0 %v540
        %v688 = vpop.f32.mrb[0].mxu0
        %v689 = vadd.f32 %v499, %v688
        %v690 = vpop.f32.mrb[0].mxu0
        %v691 = vadd.f32 %v503, %v690
        %v692 = vpop.f32.mrb[0].mxu0
        %v693 = vadd.f32 %v499, %v692
        %v694 = vpop.f32.mrb[0].mxu0
        %v695 = vadd.f32 %v503, %v694
        %696 = vmatprep.mubr.bf16.mxu0 0
        %697 = vmatmul.mubr.bf16.gmra.mrb[0].mxu0 %v541
        %v698 = vpop.f32.mrb[0].mxu0
        %v699 = vadd.f32 %v499, %v698
        %v700 = vpop.f32.mrb[0].mxu0
        %v701 = vadd.f32 %v503, %v700
        %v702 = vpop.f32.mrb[0].mxu0
        %v703 = vadd.f32 %v499, %v702
        %v704 = vpop.f32.mrb[0].mxu0
        %v705 = vadd.f32 %v503, %v704
        %706 = vmatprep.mubr.bf16.mxu0 0
        %707 = vmatmul.mubr.bf16.gmra.mrb[0].mxu0 %v542
        %v708 = vpop.f32.mrb[0].mxu0
        %v709 = vadd.f32 %v499, %v708
        %v710 = vpop.f32.mrb[0].mxu0
        %v711 = vadd.f32 %v503, %v710
        %v712 = vpop.f32.mrb[0].mxu0
        %v713 = vadd.f32 %v499, %v712
        %v714 = vpop.f32.mrb[0].mxu0
        %v715 = vadd.f32 %v503, %v714
        %716 = vmatprep.mubr.bf16.mxu0 0
        %717 = vmatmul.mubr.bf16.gmra.mrb[0].mxu0 %v543
        %v718 = vpop.f32.mrb[0].mxu0
        %v719 = vadd.f32 %v499, %v718
        %v720 = vpop.f32.mrb[0].mxu0
        %v721 = vadd.f32 %v503, %v720
        %v722 = vpop.f32.mrb[0].mxu0
        %v723 = vadd.f32 %v499, %v722
        %v724 = vpop.f32.mrb[0].mxu0
        %v725 = vadd.f32 %v503, %v724
        %726 = vmatprep.mubr.bf16.mxu0 0
        %727 = vmatmul.mubr.bf16.gmra.mrb[0].mxu0 %v544
        %v728 = vpop.f32.mrb[0].mxu0
        %v729 = vadd.f32 %v499, %v728
        %v730 = vpop.f32.mrb[0].mxu0
        %v731 = vadd.f32 %v503, %v730
        %v732 = vpop.f32.mrb[0].mxu0
        %v733 = vadd.f32 %v499, %v732
        %v734 = vpop.f32.mrb[0].mxu0
        %v735 = vadd.f32 %v503, %v734
        %736 = vmatprep.mubr.bf16.mxu0 0
        %737 = vmatmul.mubr.bf16.gmra.mrb[0].mxu0 %v545
        %v738 = vpop.f32.mrb[0].mxu0
        %v739 = vadd.f32 %v499, %v738
        %v740 = vpop.f32.mrb[0].mxu0
        %v741 = vadd.f32 %v503, %v740
        %v742 = vpop.f32.mrb[0].mxu0
        %v743 = vadd.f32 %v499, %v742
        %v744 = vpop.f32.mrb[0].mxu0
        %v745 = vadd.f32 %v503, %v744
        %746 = vdwg.mxu0
        %v747 = vmax.f32 %v669, 0.0
        %v748 = vmax.f32 %v671, 0.0
        %v749 = vmax.f32 %v673, 0.0
        %v750 = vmax.f32 %v675, 0.0
        %v751 = vmax.f32 %v679, 0.0
        %v752 = vmax.f32 %v681, 0.0
        %v753 = vmax.f32 %v683, 0.0
        %v754 = vmax.f32 %v685, 0.0
        %v755 = vmax.f32 %v689, 0.0
        %v756 = vmax.f32 %v691, 0.0
        %v757 = vmax.f32 %v693, 0.0
        %v758 = vmax.f32 %v695, 0.0
        %v759 = vmax.f32 %v699, 0.0
        %v760 = vmax.f32 %v701, 0.0
        %v761 = vmax.f32 %v703, 0.0
        %v762 = vmax.f32 %v705, 0.0
        %v763 = vmax.f32 %v709, 0.0
        %v764 = vmax.f32 %v711, 0.0
        %v765 = vmax.f32 %v713, 0.0
        %v766 = vmax.f32 %v715, 0.0
        %v767 = vmax.f32 %v719, 0.0
        %v768 = vmax.f32 %v721, 0.0
        %v769 = vmax.f32 %v723, 0.0
        %v770 = vmax.f32 %v725, 0.0
        %v771 = vmax.f32 %v729, 0.0
        %v772 = vmax.f32 %v731, 0.0
        %v773 = vmax.f32 %v733, 0.0
        %v774 = vmax.f32 %v735, 0.0
        %v775 = vmax.f32 %v739, 0.0
        %v776 = vmax.f32 %v741, 0.0
        %v777 = vmax.f32 %v743, 0.0
        %v778 = vmax.f32 %v745, 0.0
        %v779 = vpack.c.bf16 %v749, %v747
        %v780 = vpack.c.bf16 %v750, %v748
        %v781 = vpack.c.bf16 %v753, %v751
        %v782 = vpack.c.bf16 %v754, %v752
        %v783 = vpack.c.bf16 %v757, %v755
        %v784 = vpack.c.bf16 %v758, %v756
        %v785 = vpack.c.bf16 %v761, %v759
        %v786 = vpack.c.bf16 %v762, %v760
        %v787 = vpack.c.bf16 %v765, %v763
        %v788 = vpack.c.bf16 %v766, %v764
        %v789 = vpack.c.bf16 %v769, %v767
        %v790 = vpack.c.bf16 %v770, %v768
        %v791 = vpack.c.bf16 %v773, %v771
        %v792 = vpack.c.bf16 %v774, %v772
        %v793 = vpack.c.bf16 %v777, %v775
        %v794 = vpack.c.bf16 %v778, %v776
        %v795 = vld [vmem:[#allocation8] sm:$0xff]
        %v796 = vld [vmem:[#allocation8 + $0x8] sm:$0xff]
        %v797 = vld [vmem:[#allocation8 + $0x10] sm:$0xff]
        %v798 = vld [vmem:[#allocation8 + $0x18] sm:$0xff]
        %v799 = vld [vmem:[#allocation8 + $0x20] sm:$0xff]
        %v800 = vld [vmem:[#allocation8 + $0x28] sm:$0xff]
        %v801 = vld [vmem:[#allocation8 + $0x30] sm:$0xff]
        %v802 = vld [vmem:[#allocation8 + $0x38] sm:$0xff]
        %v803 = vld [vmem:[#allocation8 + $0x40] sm:$0xff]
        %v804 = vld [vmem:[#allocation8 + $0x48] sm:$0xff]
        %v805 = vld [vmem:[#allocation8 + $0x50] sm:$0xff]
        %v806 = vld [vmem:[#allocation8 + $0x58] sm:$0xff]
        %v807 = vld [vmem:[#allocation8 + $0x60] sm:$0xff]
        %v808 = vld [vmem:[#allocation8 + $0x68] sm:$0xff]
        %v809 = vld [vmem:[#allocation8 + $0x70] sm:$0xff]
        %v810 = vld [vmem:[#allocation8 + $0x78] sm:$0xff]
        %v811 = vld [vmem:[#allocation8 + $0x80] sm:$0xff]
        %v812 = vld [vmem:[#allocation8 + $0x88] sm:$0xff]
        %v813 = vld [vmem:[#allocation8 + $0x90] sm:$0xff]
        %v814 = vld [vmem:[#allocation8 + $0x98] sm:$0xff]
        %v815 = vld [vmem:[#allocation8 + $0xa0] sm:$0xff]
        %v816 = vld [vmem:[#allocation8 + $0xa8] sm:$0xff]
        %v817 = vld [vmem:[#allocation8 + $0xb0] sm:$0xff]
        %v818 = vld [vmem:[#allocation8 + $0xb8] sm:$0xff]
        %v819 = vld [vmem:[#allocation8 + $0xc0] sm:$0xff]
        %v820 = vld [vmem:[#allocation8 + $0xc8] sm:$0xff]
        %v821 = vld [vmem:[#allocation8 + $0xd0] sm:$0xff]
        %v822 = vld [vmem:[#allocation8 + $0xd8] sm:$0xff]
        %v823 = vld [vmem:[#allocation8 + $0xe0] sm:$0xff]
        %v824 = vld [vmem:[#allocation8 + $0xe8] sm:$0xff]
        %v825 = vld [vmem:[#allocation8 + $0xf0] sm:$0xff]
        %v826 = vld [vmem:[#allocation8 + $0xf8] sm:$0xff]
        %v827 = vld [vmem:[#allocation10] sm:$0x3]
        %v829 = vlaneseq
        %v830 = vshrl.u32 %v829, 7
        %v831 = vsub.s32 0, %v830
        %v832 = vrot.slane %v827, %v831
        %v833 = vlaneseq
        %v834 = vshrl.u32 %v833, 7
        %v835 = vsub.s32 1, %v834
        %v836 = vrot.slane %v827, %v835
        %v871 = vunpack.c.l.b16 %v795
        %v872 = vunpack.c.h.b16 %v795
        %v873 = vunpack.c.l.b16 %v796
        %v874 = vunpack.c.h.b16 %v796
        %v875 = vunpack.c.l.b16 %v797
        %v876 = vunpack.c.h.b16 %v797
        %v877 = vunpack.c.l.b16 %v798
        %v878 = vunpack.c.h.b16 %v798
        %v879 = vunpack.c.l.b16 %v799
        %v880 = vunpack.c.h.b16 %v799
        %v881 = vunpack.c.l.b16 %v800
        %v882 = vunpack.c.h.b16 %v800
        %v883 = vunpack.c.l.b16 %v801
        %v884 = vunpack.c.h.b16 %v801
        %v885 = vunpack.c.l.b16 %v802
        %v886 = vunpack.c.h.b16 %v802
        %v887 = vunpack.c.l.b16 %v803
        %v888 = vunpack.c.h.b16 %v803
        %v889 = vunpack.c.l.b16 %v804
        %v890 = vunpack.c.h.b16 %v804
        %v891 = vunpack.c.l.b16 %v805
        %v892 = vunpack.c.h.b16 %v805
        %v893 = vunpack.c.l.b16 %v806
        %v894 = vunpack.c.h.b16 %v806
        %v895 = vunpack.c.l.b16 %v807
        %v896 = vunpack.c.h.b16 %v807
        %v897 = vunpack.c.l.b16 %v808
        %v898 = vunpack.c.h.b16 %v808
        %v899 = vunpack.c.l.b16 %v809
        %v900 = vunpack.c.h.b16 %v809
        %v901 = vunpack.c.l.b16 %v810
        %v902 = vunpack.c.h.b16 %v810
        %v903 = vunpack.c.l.b16 %v811
        %v904 = vunpack.c.h.b16 %v811
        %v905 = vunpack.c.l.b16 %v812
        %v906 = vunpack.c.h.b16 %v812
        %v907 = vunpack.c.l.b16 %v813
        %v908 = vunpack.c.h.b16 %v813
        %v909 = vunpack.c.l.b16 %v814
        %v910 = vunpack.c.h.b16 %v814
        %v911 = vunpack.c.l.b16 %v815
        %v912 = vunpack.c.h.b16 %v815
        %v913 = vunpack.c.l.b16 %v816
        %v914 = vunpack.c.h.b16 %v816
        %v915 = vunpack.c.l.b16 %v817
        %v916 = vunpack.c.h.b16 %v817
        %v917 = vunpack.c.l.b16 %v818
        %v918 = vunpack.c.h.b16 %v818
        %v919 = vunpack.c.l.b16 %v819
        %v920 = vunpack.c.h.b16 %v819
        %v921 = vunpack.c.l.b16 %v820
        %v922 = vunpack.c.h.b16 %v820
        %v923 = vunpack.c.l.b16 %v821
        %v924 = vunpack.c.h.b16 %v821
        %v925 = vunpack.c.l.b16 %v822
        %v926 = vunpack.c.h.b16 %v822
        %v927 = vunpack.c.l.b16 %v823
        %v928 = vunpack.c.h.b16 %v823
        %v929 = vunpack.c.l.b16 %v824
        %v930 = vunpack.c.h.b16 %v824
        %v931 = vunpack.c.l.b16 %v825
        %v932 = vunpack.c.h.b16 %v825
        %v933 = vunpack.c.l.b16 %v826
        %v934 = vunpack.c.h.b16 %v826
        %v935 = vpack.c.b16 %v873, %v871
        %v936 = vpack.c.b16 %v874, %v872
        %v937 = vpack.c.b16 %v877, %v875
        %v938 = vpack.c.b16 %v878, %v876
        %v939 = vpack.c.b16 %v881, %v879
        %v940 = vpack.c.b16 %v882, %v880
        %v941 = vpack.c.b16 %v885, %v883
        %v942 = vpack.c.b16 %v886, %v884
        %v943 = vpack.c.b16 %v889, %v887
        %v944 = vpack.c.b16 %v890, %v888
        %v945 = vpack.c.b16 %v893, %v891
        %v946 = vpack.c.b16 %v894, %v892
        %v947 = vpack.c.b16 %v897, %v895
        %v948 = vpack.c.b16 %v898, %v896
        %v949 = vpack.c.b16 %v901, %v899
        %v950 = vpack.c.b16 %v902, %v900
        %v951 = vpack.c.b16 %v905, %v903
        %v952 = vpack.c.b16 %v906, %v904
        %v953 = vpack.c.b16 %v909, %v907
        %v954 = vpack.c.b16 %v910, %v908
        %v955 = vpack.c.b16 %v913, %v911
        %v956 = vpack.c.b16 %v914, %v912
        %v957 = vpack.c.b16 %v917, %v915
        %v958 = vpack.c.b16 %v918, %v916
        %v959 = vpack.c.b16 %v921, %v919
        %v960 = vpack.c.b16 %v922, %v920
        %v961 = vpack.c.b16 %v925, %v923
        %v962 = vpack.c.b16 %v926, %v924
        %v963 = vpack.c.b16 %v929, %v927
        %v964 = vpack.c.b16 %v930, %v928
        %v965 = vpack.c.b16 %v933, %v931
        %v966 = vpack.c.b16 %v934, %v932
        %999 = vmatprep.subr.bf16.mxu0 %v936
        %1000 = vmatpush1.bf16.msra.mxu0 %v935
        %1001 = vmatprep.subr.bf16.mxu0 %v938
        %1002 = vmatpush1.bf16.msra.mxu0 %v937
        %1003 = vmatprep.subr.bf16.mxu0 %v940
        %1004 = vmatpush1.bf16.msra.mxu0 %v939
        %1005 = vmatprep.subr.bf16.mxu0 %v942
        %1006 = vmatpush1.bf16.msra.mxu0 %v941
        %1007 = vmatprep.subr.bf16.mxu0 %v944
        %1008 = vmatpush1.bf16.msra.mxu0 %v943
        %1009 = vmatprep.subr.bf16.mxu0 %v946
        %1010 = vmatpush1.bf16.msra.mxu0 %v945
        %1011 = vmatprep.subr.bf16.mxu0 %v948
        %1012 = vmatpush1.bf16.msra.mxu0 %v947
        %1013 = vmatprep.subr.bf16.mxu0 %v950
        %1014 = vmatpush1.bf16.msra.mxu0 %v949
        %1015 = vmatprep.subr.bf16.mxu0 %v952
        %1016 = vmatpush1.bf16.msra.mxu0 %v951
        %1017 = vmatprep.subr.bf16.mxu0 %v954
        %1018 = vmatpush1.bf16.msra.mxu0 %v953
        %1019 = vmatprep.subr.bf16.mxu0 %v956
        %1020 = vmatpush1.bf16.msra.mxu0 %v955
        %1021 = vmatprep.subr.bf16.mxu0 %v958
        %1022 = vmatpush1.bf16.msra.mxu0 %v957
        %1023 = vmatprep.subr.bf16.mxu0 %v960
        %1024 = vmatpush1.bf16.msra.mxu0 %v959
        %1025 = vmatprep.subr.bf16.mxu0 %v962
        %1026 = vmatpush1.bf16.msra.mxu0 %v961
        %1027 = vmatprep.subr.bf16.mxu0 %v964
        %1028 = vmatpush1.bf16.msra.mxu0 %v963
        %1029 = vmatprep.subr.bf16.mxu0 %v966
        %1030 = vmatpush1.bf16.msra.mxu0 %v965
        %1031 = vmatprep.mubr.bf16.mxu0 %v780
        %1032 = vmatmul.mubr.bf16.gmra.mrb[0].mxu0 %v779
        %v1033 = vpop.f32.mrb[0].mxu0
        %v1034 = vadd.f32 %v832, %v1033
        %v1035 = vpop.f32.mrb[0].mxu0
        %v1036 = vadd.f32 %v836, %v1035
        %v1037 = vpop.f32.mrb[0].mxu0
        %v1038 = vadd.f32 %v832, %v1037
        %v1039 = vpop.f32.mrb[0].mxu0
        %v1040 = vadd.f32 %v836, %v1039
        %1041 = vmatprep.mubr.bf16.mxu0 %v782
        %1042 = vmatmul.mubr.bf16.gmra.mrb[0].mxu0 %v781
        %v1043 = vpop.f32.mrb[0].mxu0
        %v1044 = vadd.f32 %v832, %v1043
        %v1045 = vpop.f32.mrb[0].mxu0
        %v1046 = vadd.f32 %v836, %v1045
        %v1047 = vpop.f32.mrb[0].mxu0
        %v1048 = vadd.f32 %v832, %v1047
        %v1049 = vpop.f32.mrb[0].mxu0
        %v1050 = vadd.f32 %v836, %v1049
        %1051 = vmatprep.mubr.bf16.mxu0 %v784
        %1052 = vmatmul.mubr.bf16.gmra.mrb[0].mxu0 %v783
        %v1053 = vpop.f32.mrb[0].mxu0
        %v1054 = vadd.f32 %v832, %v1053
        %v1055 = vpop.f32.mrb[0].mxu0
        %v1056 = vadd.f32 %v836, %v1055
        %v1057 = vpop.f32.mrb[0].mxu0
        %v1058 = vadd.f32 %v832, %v1057
        %v1059 = vpop.f32.mrb[0].mxu0
        %v1060 = vadd.f32 %v836, %v1059
        %1061 = vmatprep.mubr.bf16.mxu0 %v786
        %1062 = vmatmul.mubr.bf16.gmra.mrb[0].mxu0 %v785
        %v1063 = vpop.f32.mrb[0].mxu0
        %v1064 = vadd.f32 %v832, %v1063
        %v1065 = vpop.f32.mrb[0].mxu0
        %v1066 = vadd.f32 %v836, %v1065
        %v1067 = vpop.f32.mrb[0].mxu0
        %v1068 = vadd.f32 %v832, %v1067
        %v1069 = vpop.f32.mrb[0].mxu0
        %v1070 = vadd.f32 %v836, %v1069
        %1071 = vmatprep.mubr.bf16.mxu0 %v788
        %1072 = vmatmul.mubr.bf16.gmra.mrb[0].mxu0 %v787
        %v1073 = vpop.f32.mrb[0].mxu0
        %v1074 = vadd.f32 %v832, %v1073
        %v1075 = vpop.f32.mrb[0].mxu0
        %v1076 = vadd.f32 %v836, %v1075
        %v1077 = vpop.f32.mrb[0].mxu0
        %v1078 = vadd.f32 %v832, %v1077
        %v1079 = vpop.f32.mrb[0].mxu0
        %v1080 = vadd.f32 %v836, %v1079
        %1081 = vmatprep.mubr.bf16.mxu0 %v790
        %1082 = vmatmul.mubr.bf16.gmra.mrb[0].mxu0 %v789
        %v1083 = vpop.f32.mrb[0].mxu0
        %v1084 = vadd.f32 %v832, %v1083
        %v1085 = vpop.f32.mrb[0].mxu0
        %v1086 = vadd.f32 %v836, %v1085
        %v1087 = vpop.f32.mrb[0].mxu0
        %v1088 = vadd.f32 %v832, %v1087
        %v1089 = vpop.f32.mrb[0].mxu0
        %v1090 = vadd.f32 %v836, %v1089
        %1091 = vmatprep.mubr.bf16.mxu0 %v792
        %1092 = vmatmul.mubr.bf16.gmra.mrb[0].mxu0 %v791
        %v1093 = vpop.f32.mrb[0].mxu0
        %v1094 = vadd.f32 %v832, %v1093
        %v1095 = vpop.f32.mrb[0].mxu0
        %v1096 = vadd.f32 %v836, %v1095
        %v1097 = vpop.f32.mrb[0].mxu0
        %v1098 = vadd.f32 %v832, %v1097
        %v1099 = vpop.f32.mrb[0].mxu0
        %v1100 = vadd.f32 %v836, %v1099
        %1101 = vmatprep.mubr.bf16.mxu0 %v794
        %1102 = vmatmul.mubr.bf16.gmra.mrb[0].mxu0 %v793
        %v1103 = vpop.f32.mrb[0].mxu0
        %v1104 = vadd.f32 %v832, %v1103
        %v1105 = vpop.f32.mrb[0].mxu0
        %v1106 = vadd.f32 %v836, %v1105
        %v1107 = vpop.f32.mrb[0].mxu0
        %v1108 = vadd.f32 %v832, %v1107
        %v1109 = vpop.f32.mrb[0].mxu0
        %v1110 = vadd.f32 %v836, %v1109
        %1111 = vdwg.mxu0
        %v1112 = vmax.f32 %v1034, 0.0
        %v1113 = vmax.f32 %v1036, 0.0
        %v1114 = vmax.f32 %v1038, 0.0
        %v1115 = vmax.f32 %v1040, 0.0
        %v1116 = vmax.f32 %v1044, 0.0
        %v1117 = vmax.f32 %v1046, 0.0
        %v1118 = vmax.f32 %v1048, 0.0
        %v1119 = vmax.f32 %v1050, 0.0
        %v1120 = vmax.f32 %v1054, 0.0
        %v1121 = vmax.f32 %v1056, 0.0
        %v1122 = vmax.f32 %v1058, 0.0
        %v1123 = vmax.f32 %v1060, 0.0
        %v1124 = vmax.f32 %v1064, 0.0
        %v1125 = vmax.f32 %v1066, 0.0
        %v1126 = vmax.f32 %v1068, 0.0
        %v1127 = vmax.f32 %v1070, 0.0
        %v1128 = vmax.f32 %v1074, 0.0
        %v1129 = vmax.f32 %v1076, 0.0
        %v1130 = vmax.f32 %v1078, 0.0
        %v1131 = vmax.f32 %v1080, 0.0
        %v1132 = vmax.f32 %v1084, 0.0
        %v1133 = vmax.f32 %v1086, 0.0
        %v1134 = vmax.f32 %v1088, 0.0
        %v1135 = vmax.f32 %v1090, 0.0
        %v1136 = vmax.f32 %v1094, 0.0
        %v1137 = vmax.f32 %v1096, 0.0
        %v1138 = vmax.f32 %v1098, 0.0
        %v1139 = vmax.f32 %v1100, 0.0
        %v1140 = vmax.f32 %v1104, 0.0
        %v1141 = vmax.f32 %v1106, 0.0
        %v1142 = vmax.f32 %v1108, 0.0
        %v1143 = vmax.f32 %v1110, 0.0
        %v1144 = vpack.c.bf16 %v1114, %v1112
        %v1145 = vpack.c.bf16 %v1115, %v1113
        %v1146 = vpack.c.bf16 %v1118, %v1116
        %v1147 = vpack.c.bf16 %v1119, %v1117
        %v1148 = vpack.c.bf16 %v1122, %v1120
        %v1149 = vpack.c.bf16 %v1123, %v1121
        %v1150 = vpack.c.bf16 %v1126, %v1124
        %v1151 = vpack.c.bf16 %v1127, %v1125
        %v1152 = vpack.c.bf16 %v1130, %v1128
        %v1153 = vpack.c.bf16 %v1131, %v1129
        %v1154 = vpack.c.bf16 %v1134, %v1132
        %v1155 = vpack.c.bf16 %v1135, %v1133
        %v1156 = vpack.c.bf16 %v1138, %v1136
        %v1157 = vpack.c.bf16 %v1139, %v1137
        %v1158 = vpack.c.bf16 %v1142, %v1140
        %v1159 = vpack.c.bf16 %v1143, %v1141
        %v1160 = vld [vmem:[#allocation11] sm:$0xff]
        %v1161 = vld [vmem:[#allocation11 + $0x8] sm:$0xff]
        %v1162 = vld [vmem:[#allocation11 + $0x10] sm:$0xff]
        %v1163 = vld [vmem:[#allocation11 + $0x18] sm:$0xff]
        %v1164 = vld [vmem:[#allocation11 + $0x20] sm:$0xff]
        %v1165 = vld [vmem:[#allocation11 + $0x28] sm:$0xff]
        %v1166 = vld [vmem:[#allocation11 + $0x30] sm:$0xff]
        %v1167 = vld [vmem:[#allocation11 + $0x38] sm:$0xff]
        %v1168 = vld [vmem:[#allocation11 + $0x40] sm:$0xff]
        %v1169 = vld [vmem:[#allocation11 + $0x48] sm:$0xff]
        %v1170 = vld [vmem:[#allocation11 + $0x50] sm:$0xff]
        %v1171 = vld [vmem:[#allocation11 + $0x58] sm:$0xff]
        %v1172 = vld [vmem:[#allocation11 + $0x60] sm:$0xff]
        %v1173 = vld [vmem:[#allocation11 + $0x68] sm:$0xff]
        %v1174 = vld [vmem:[#allocation11 + $0x70] sm:$0xff]
        %v1175 = vld [vmem:[#allocation11 + $0x78] sm:$0xff]
        %v1176 = vld [vmem:[#allocation11 + $0x80] sm:$0xff]
        %v1177 = vld [vmem:[#allocation11 + $0x88] sm:$0xff]
        %v1178 = vld [vmem:[#allocation11 + $0x90] sm:$0xff]
        %v1179 = vld [vmem:[#allocation11 + $0x98] sm:$0xff]
        %v1180 = vld [vmem:[#allocation11 + $0xa0] sm:$0xff]
        %v1181 = vld [vmem:[#allocation11 + $0xa8] sm:$0xff]
        %v1182 = vld [vmem:[#allocation11 + $0xb0] sm:$0xff]
        %v1183 = vld [vmem:[#allocation11 + $0xb8] sm:$0xff]
        %v1184 = vld [vmem:[#allocation11 + $0xc0] sm:$0xff]
        %v1185 = vld [vmem:[#allocation11 + $0xc8] sm:$0xff]
        %v1186 = vld [vmem:[#allocation11 + $0xd0] sm:$0xff]
        %v1187 = vld [vmem:[#allocation11 + $0xd8] sm:$0xff]
        %v1188 = vld [vmem:[#allocation11 + $0xe0] sm:$0xff]
        %v1189 = vld [vmem:[#allocation11 + $0xe8] sm:$0xff]
        %v1190 = vld [vmem:[#allocation11 + $0xf0] sm:$0xff]
        %v1191 = vld [vmem:[#allocation11 + $0xf8] sm:$0xff]
        %v1192 = vld [vmem:[#allocation13] sm:$0x3]
        %v1194 = vlaneseq
        %v1195 = vshrl.u32 %v1194, 7
        %v1196 = vsub.s32 0, %v1195
        %v1197 = vrot.slane %v1192, %v1196
        %v1198 = vlaneseq
        %v1199 = vshrl.u32 %v1198, 7
        %v1200 = vsub.s32 1, %v1199
        %v1201 = vrot.slane %v1192, %v1200
        %v1236 = vunpack.c.l.b16 %v1160
        %v1237 = vunpack.c.h.b16 %v1160
        %v1238 = vunpack.c.l.b16 %v1161
        %v1239 = vunpack.c.h.b16 %v1161
        %v1240 = vunpack.c.l.b16 %v1162
        %v1241 = vunpack.c.h.b16 %v1162
        %v1242 = vunpack.c.l.b16 %v1163
        %v1243 = vunpack.c.h.b16 %v1163
        %v1244 = vunpack.c.l.b16 %v1164
        %v1245 = vunpack.c.h.b16 %v1164
        %v1246 = vunpack.c.l.b16 %v1165
        %v1247 = vunpack.c.h.b16 %v1165
        %v1248 = vunpack.c.l.b16 %v1166
        %v1249 = vunpack.c.h.b16 %v1166
        %v1250 = vunpack.c.l.b16 %v1167
        %v1251 = vunpack.c.h.b16 %v1167
        %v1252 = vunpack.c.l.b16 %v1168
        %v1253 = vunpack.c.h.b16 %v1168
        %v1254 = vunpack.c.l.b16 %v1169
        %v1255 = vunpack.c.h.b16 %v1169
        %v1256 = vunpack.c.l.b16 %v1170
        %v1257 = vunpack.c.h.b16 %v1170
        %v1258 = vunpack.c.l.b16 %v1171
        %v1259 = vunpack.c.h.b16 %v1171
        %v1260 = vunpack.c.l.b16 %v1172
        %v1261 = vunpack.c.h.b16 %v1172
        %v1262 = vunpack.c.l.b16 %v1173
        %v1263 = vunpack.c.h.b16 %v1173
        %v1264 = vunpack.c.l.b16 %v1174
        %v1265 = vunpack.c.h.b16 %v1174
        %v1266 = vunpack.c.l.b16 %v1175
        %v1267 = vunpack.c.h.b16 %v1175
        %v1268 = vunpack.c.l.b16 %v1176
        %v1269 = vunpack.c.h.b16 %v1176
        %v1270 = vunpack.c.l.b16 %v1177
        %v1271 = vunpack.c.h.b16 %v1177
        %v1272 = vunpack.c.l.b16 %v1178
        %v1273 = vunpack.c.h.b16 %v1178
        %v1274 = vunpack.c.l.b16 %v1179
        %v1275 = vunpack.c.h.b16 %v1179
        %v1276 = vunpack.c.l.b16 %v1180
        %v1277 = vunpack.c.h.b16 %v1180
        %v1278 = vunpack.c.l.b16 %v1181
        %v1279 = vunpack.c.h.b16 %v1181
        %v1280 = vunpack.c.l.b16 %v1182
        %v1281 = vunpack.c.h.b16 %v1182
        %v1282 = vunpack.c.l.b16 %v1183
        %v1283 = vunpack.c.h.b16 %v1183
        %v1284 = vunpack.c.l.b16 %v1184
        %v1285 = vunpack.c.h.b16 %v1184
        %v1286 = vunpack.c.l.b16 %v1185
        %v1287 = vunpack.c.h.b16 %v1185
        %v1288 = vunpack.c.l.b16 %v1186
        %v1289 = vunpack.c.h.b16 %v1186
        %v1290 = vunpack.c.l.b16 %v1187
        %v1291 = vunpack.c.h.b16 %v1187
        %v1292 = vunpack.c.l.b16 %v1188
        %v1293 = vunpack.c.h.b16 %v1188
        %v1294 = vunpack.c.l.b16 %v1189
        %v1295 = vunpack.c.h.b16 %v1189
        %v1296 = vunpack.c.l.b16 %v1190
        %v1297 = vunpack.c.h.b16 %v1190
        %v1298 = vunpack.c.l.b16 %v1191
        %v1299 = vunpack.c.h.b16 %v1191
        %v1300 = vpack.c.b16 %v1238, %v1236
        %v1301 = vpack.c.b16 %v1239, %v1237
        %v1302 = vpack.c.b16 %v1242, %v1240
        %v1303 = vpack.c.b16 %v1243, %v1241
        %v1304 = vpack.c.b16 %v1246, %v1244
        %v1305 = vpack.c.b16 %v1247, %v1245
        %v1306 = vpack.c.b16 %v1250, %v1248
        %v1307 = vpack.c.b16 %v1251, %v1249
        %v1308 = vpack.c.b16 %v1254, %v1252
        %v1309 = vpack.c.b16 %v1255, %v1253
        %v1310 = vpack.c.b16 %v1258, %v1256
        %v1311 = vpack.c.b16 %v1259, %v1257
        %v1312 = vpack.c.b16 %v1262, %v1260
        %v1313 = vpack.c.b16 %v1263, %v1261
        %v1314 = vpack.c.b16 %v1266, %v1264
        %v1315 = vpack.c.b16 %v1267, %v1265
        %v1316 = vpack.c.b16 %v1270, %v1268
        %v1317 = vpack.c.b16 %v1271, %v1269
        %v1318 = vpack.c.b16 %v1274, %v1272
        %v1319 = vpack.c.b16 %v1275, %v1273
        %v1320 = vpack.c.b16 %v1278, %v1276
        %v1321 = vpack.c.b16 %v1279, %v1277
        %v1322 = vpack.c.b16 %v1282, %v1280
        %v1323 = vpack.c.b16 %v1283, %v1281
        %v1324 = vpack.c.b16 %v1286, %v1284
        %v1325 = vpack.c.b16 %v1287, %v1285
        %v1326 = vpack.c.b16 %v1290, %v1288
        %v1327 = vpack.c.b16 %v1291, %v1289
        %v1328 = vpack.c.b16 %v1294, %v1292
        %v1329 = vpack.c.b16 %v1295, %v1293
        %v1330 = vpack.c.b16 %v1298, %v1296
        %v1331 = vpack.c.b16 %v1299, %v1297
        %1364 = vmatprep.subr.bf16.mxu0 %v1301
        %1365 = vmatpush1.bf16.msra.mxu0 %v1300
        %1366 = vmatprep.subr.bf16.mxu0 %v1303
        %1367 = vmatpush1.bf16.msra.mxu0 %v1302
        %1368 = vmatprep.subr.bf16.mxu0 %v1305
        %1369 = vmatpush1.bf16.msra.mxu0 %v1304
        %1370 = vmatprep.subr.bf16.mxu0 %v1307
        %1371 = vmatpush1.bf16.msra.mxu0 %v1306
        %1372 = vmatprep.subr.bf16.mxu0 %v1309
        %1373 = vmatpush1.bf16.msra.mxu0 %v1308
        %1374 = vmatprep.subr.bf16.mxu0 %v1311
        %1375 = vmatpush1.bf16.msra.mxu0 %v1310
        %1376 = vmatprep.subr.bf16.mxu0 %v1313
        %1377 = vmatpush1.bf16.msra.mxu0 %v1312
        %1378 = vmatprep.subr.bf16.mxu0 %v1315
        %1379 = vmatpush1.bf16.msra.mxu0 %v1314
        %1380 = vmatprep.subr.bf16.mxu0 %v1317
        %1381 = vmatpush1.bf16.msra.mxu0 %v1316
        %1382 = vmatprep.subr.bf16.mxu0 %v1319
        %1383 = vmatpush1.bf16.msra.mxu0 %v1318
        %1384 = vmatprep.subr.bf16.mxu0 %v1321
        %1385 = vmatpush1.bf16.msra.mxu0 %v1320
        %1386 = vmatprep.subr.bf16.mxu0 %v1323
        %1387 = vmatpush1.bf16.msra.mxu0 %v1322
        %1388 = vmatprep.subr.bf16.mxu0 %v1325
        %1389 = vmatpush1.bf16.msra.mxu0 %v1324
        %1390 = vmatprep.subr.bf16.mxu0 %v1327
        %1391 = vmatpush1.bf16.msra.mxu0 %v1326
        %1392 = vmatprep.subr.bf16.mxu0 %v1329
        %1393 = vmatpush1.bf16.msra.mxu0 %v1328
        %1394 = vmatprep.subr.bf16.mxu0 %v1331
        %1395 = vmatpush1.bf16.msra.mxu0 %v1330
        %1396 = vmatprep.mubr.bf16.mxu0 %v1145
        %1397 = vmatmul.mubr.bf16.gmra.mrb[0].mxu0 %v1144
        %v1398 = vpop.f32.mrb[0].mxu0
        %v1399 = vadd.f32 %v1197, %v1398
        %v1400 = vpop.f32.mrb[0].mxu0
        %v1401 = vadd.f32 %v1201, %v1400
        %v1402 = vpop.f32.mrb[0].mxu0
        %v1403 = vadd.f32 %v1197, %v1402
        %v1404 = vpop.f32.mrb[0].mxu0
        %v1405 = vadd.f32 %v1201, %v1404
        %1406 = vmatprep.mubr.bf16.mxu0 %v1147
        %1407 = vmatmul.mubr.bf16.gmra.mrb[0].mxu0 %v1146
        %v1408 = vpop.f32.mrb[0].mxu0
        %v1409 = vadd.f32 %v1197, %v1408
        %v1410 = vpop.f32.mrb[0].mxu0
        %v1411 = vadd.f32 %v1201, %v1410
        %v1412 = vpop.f32.mrb[0].mxu0
        %v1413 = vadd.f32 %v1197, %v1412
        %v1414 = vpop.f32.mrb[0].mxu0
        %v1415 = vadd.f32 %v1201, %v1414
        %1416 = vmatprep.mubr.bf16.mxu0 %v1149
        %1417 = vmatmul.mubr.bf16.gmra.mrb[0].mxu0 %v1148
        %v1418 = vpop.f32.mrb[0].mxu0
        %v1419 = vadd.f32 %v1197, %v1418
        %v1420 = vpop.f32.mrb[0].mxu0
        %v1421 = vadd.f32 %v1201, %v1420
        %v1422 = vpop.f32.mrb[0].mxu0
        %v1423 = vadd.f32 %v1197, %v1422
        %v1424 = vpop.f32.mrb[0].mxu0
        %v1425 = vadd.f32 %v1201, %v1424
        %1426 = vmatprep.mubr.bf16.mxu0 %v1151
        %1427 = vmatmul.mubr.bf16.gmra.mrb[0].mxu0 %v1150
        %v1428 = vpop.f32.mrb[0].mxu0
        %v1429 = vadd.f32 %v1197, %v1428
        %v1430 = vpop.f32.mrb[0].mxu0
        %v1431 = vadd.f32 %v1201, %v1430
        %v1432 = vpop.f32.mrb[0].mxu0
        %v1433 = vadd.f32 %v1197, %v1432
        %v1434 = vpop.f32.mrb[0].mxu0
        %v1435 = vadd.f32 %v1201, %v1434
        %1436 = vmatprep.mubr.bf16.mxu0 %v1153
        %1437 = vmatmul.mubr.bf16.gmra.mrb[0].mxu0 %v1152
        %v1438 = vpop.f32.mrb[0].mxu0
        %v1439 = vadd.f32 %v1197, %v1438
        %v1440 = vpop.f32.mrb[0].mxu0
        %v1441 = vadd.f32 %v1201, %v1440
        %v1442 = vpop.f32.mrb[0].mxu0
        %v1443 = vadd.f32 %v1197, %v1442
        %v1444 = vpop.f32.mrb[0].mxu0
        %v1445 = vadd.f32 %v1201, %v1444
        %1446 = vmatprep.mubr.bf16.mxu0 %v1155
        %1447 = vmatmul.mubr.bf16.gmra.mrb[0].mxu0 %v1154
        %v1448 = vpop.f32.mrb[0].mxu0
        %v1449 = vadd.f32 %v1197, %v1448
        %v1450 = vpop.f32.mrb[0].mxu0
        %v1451 = vadd.f32 %v1201, %v1450
        %v1452 = vpop.f32.mrb[0].mxu0
        %v1453 = vadd.f32 %v1197, %v1452
        %v1454 = vpop.f32.mrb[0].mxu0
        %v1455 = vadd.f32 %v1201, %v1454
        %1456 = vmatprep.mubr.bf16.mxu0 %v1157
        %1457 = vmatmul.mubr.bf16.gmra.mrb[0].mxu0 %v1156
        %v1458 = vpop.f32.mrb[0].mxu0
        %v1459 = vadd.f32 %v1197, %v1458
        %v1460 = vpop.f32.mrb[0].mxu0
        %v1461 = vadd.f32 %v1201, %v1460
        %v1462 = vpop.f32.mrb[0].mxu0
        %v1463 = vadd.f32 %v1197, %v1462
        %v1464 = vpop.f32.mrb[0].mxu0
        %v1465 = vadd.f32 %v1201, %v1464
        %1466 = vmatprep.mubr.bf16.mxu0 %v1159
        %1467 = vmatmul.mubr.bf16.gmra.mrb[0].mxu0 %v1158
        %v1468 = vpop.f32.mrb[0].mxu0
        %v1469 = vadd.f32 %v1197, %v1468
        %v1470 = vpop.f32.mrb[0].mxu0
        %v1471 = vadd.f32 %v1201, %v1470
        %v1472 = vpop.f32.mrb[0].mxu0
        %v1473 = vadd.f32 %v1197, %v1472
        %v1474 = vpop.f32.mrb[0].mxu0
        %v1475 = vadd.f32 %v1201, %v1474
        %1476 = vdwg.mxu0
        %v1477 = vmax.f32 %v1399, 0.0
        %v1478 = vmax.f32 %v1401, 0.0
        %v1479 = vmax.f32 %v1403, 0.0
        %v1480 = vmax.f32 %v1405, 0.0
        %v1481 = vmax.f32 %v1409, 0.0
        %v1482 = vmax.f32 %v1411, 0.0
        %v1483 = vmax.f32 %v1413, 0.0
        %v1484 = vmax.f32 %v1415, 0.0
        %v1485 = vmax.f32 %v1419, 0.0
        %v1486 = vmax.f32 %v1421, 0.0
        %v1487 = vmax.f32 %v1423, 0.0
        %v1488 = vmax.f32 %v1425, 0.0
        %v1489 = vmax.f32 %v1429, 0.0
        %v1490 = vmax.f32 %v1431, 0.0
        %v1491 = vmax.f32 %v1433, 0.0
        %v1492 = vmax.f32 %v1435, 0.0
        %v1493 = vmax.f32 %v1439, 0.0
        %v1494 = vmax.f32 %v1441, 0.0
        %v1495 = vmax.f32 %v1443, 0.0
        %v1496 = vmax.f32 %v1445, 0.0
        %v1497 = vmax.f32 %v1449, 0.0
        %v1498 = vmax.f32 %v1451, 0.0
        %v1499 = vmax.f32 %v1453, 0.0
        %v1500 = vmax.f32 %v1455, 0.0
        %v1501 = vmax.f32 %v1459, 0.0
        %v1502 = vmax.f32 %v1461, 0.0
        %v1503 = vmax.f32 %v1463, 0.0
        %v1504 = vmax.f32 %v1465, 0.0
        %v1505 = vmax.f32 %v1469, 0.0
        %v1506 = vmax.f32 %v1471, 0.0
        %v1507 = vmax.f32 %v1473, 0.0
        %v1508 = vmax.f32 %v1475, 0.0
        %v1509 = vpack.c.bf16 %v1479, %v1477
        %v1510 = vpack.c.bf16 %v1480, %v1478
        %v1511 = vpack.c.bf16 %v1483, %v1481
        %v1512 = vpack.c.bf16 %v1484, %v1482
        %v1513 = vpack.c.bf16 %v1487, %v1485
        %v1514 = vpack.c.bf16 %v1488, %v1486
        %v1515 = vpack.c.bf16 %v1491, %v1489
        %v1516 = vpack.c.bf16 %v1492, %v1490
        %v1517 = vpack.c.bf16 %v1495, %v1493
        %v1518 = vpack.c.bf16 %v1496, %v1494
        %v1519 = vpack.c.bf16 %v1499, %v1497
        %v1520 = vpack.c.bf16 %v1500, %v1498
        %v1521 = vpack.c.bf16 %v1503, %v1501
        %v1522 = vpack.c.bf16 %v1504, %v1502
        %v1523 = vpack.c.bf16 %v1507, %v1505
        %v1524 = vpack.c.bf16 %v1508, %v1506
        %v1525 = vld [vmem:[#allocation14] sm:$0xf]
        %v1526 = vld [vmem:[#allocation14 + $0x4] sm:$0xf]
        %v1527 = vld [vmem:[#allocation14 + $0x8] sm:$0xf]
        %v1528 = vld [vmem:[#allocation14 + $0xc] sm:$0xf]
        %v1529 = vld [vmem:[#allocation14 + $0x10] sm:$0xf]
        %v1530 = vld [vmem:[#allocation14 + $0x14] sm:$0xf]
        %v1531 = vld [vmem:[#allocation14 + $0x18] sm:$0xf]
        %v1532 = vld [vmem:[#allocation14 + $0x1c] sm:$0xf]
        %v1533 = vld [vmem:[#allocation14 + $0x20] sm:$0xf]
        %v1534 = vld [vmem:[#allocation14 + $0x24] sm:$0xf]
        %v1535 = vld [vmem:[#allocation14 + $0x28] sm:$0xf]
        %v1536 = vld [vmem:[#allocation14 + $0x2c] sm:$0xf]
        %v1537 = vld [vmem:[#allocation14 + $0x30] sm:$0xf]
        %v1538 = vld [vmem:[#allocation14 + $0x34] sm:$0xf]
        %v1539 = vld [vmem:[#allocation14 + $0x38] sm:$0xf]
        %v1540 = vld [vmem:[#allocation14 + $0x3c] sm:$0xf]
        %v1541 = vld [vmem:[#allocation14 + $0x40] sm:$0xf]
        %v1542 = vld [vmem:[#allocation14 + $0x44] sm:$0xf]
        %v1543 = vld [vmem:[#allocation14 + $0x48] sm:$0xf]
        %v1544 = vld [vmem:[#allocation14 + $0x4c] sm:$0xf]
        %v1545 = vld [vmem:[#allocation14 + $0x50] sm:$0xf]
        %v1546 = vld [vmem:[#allocation14 + $0x54] sm:$0xf]
        %v1547 = vld [vmem:[#allocation14 + $0x58] sm:$0xf]
        %v1548 = vld [vmem:[#allocation14 + $0x5c] sm:$0xf]
        %v1549 = vld [vmem:[#allocation14 + $0x60] sm:$0xf]
        %v1550 = vld [vmem:[#allocation14 + $0x64] sm:$0xf]
        %v1551 = vld [vmem:[#allocation14 + $0x68] sm:$0xf]
        %v1552 = vld [vmem:[#allocation14 + $0x6c] sm:$0xf]
        %v1553 = vld [vmem:[#allocation14 + $0x70] sm:$0xf]
        %v1554 = vld [vmem:[#allocation14 + $0x74] sm:$0xf]
        %v1555 = vld [vmem:[#allocation14 + $0x78] sm:$0xf]
        %v1556 = vld [vmem:[#allocation14 + $0x7c] sm:$0xf]
        %v1557 = vld [vmem:[#allocation16] sm:$0x1]
        %v1559 = vlaneseq
        %v1560 = vshrl.u32 %v1559, 7
        %v1561 = vsub.s32 0, %v1560
        %v1562 = vrot.slane %v1557, %v1561
        %v1596 = vunpack.c.l.b16 %v1525
        %v1597 = vunpack.c.l.b16 %v1526
        %v1598 = vunpack.c.l.b16 %v1527
        %v1599 = vunpack.c.l.b16 %v1528
        %v1600 = vunpack.c.l.b16 %v1529
        %v1601 = vunpack.c.l.b16 %v1530
        %v1602 = vunpack.c.l.b16 %v1531
        %v1603 = vunpack.c.l.b16 %v1532
        %v1604 = vunpack.c.l.b16 %v1533
        %v1605 = vunpack.c.l.b16 %v1534
        %v1606 = vunpack.c.l.b16 %v1535
        %v1607 = vunpack.c.l.b16 %v1536
        %v1608 = vunpack.c.l.b16 %v1537
        %v1609 = vunpack.c.l.b16 %v1538
        %v1610 = vunpack.c.l.b16 %v1539
        %v1611 = vunpack.c.l.b16 %v1540
        %v1612 = vunpack.c.l.b16 %v1541
        %v1613 = vunpack.c.l.b16 %v1542
        %v1614 = vunpack.c.l.b16 %v1543
        %v1615 = vunpack.c.l.b16 %v1544
        %v1616 = vunpack.c.l.b16 %v1545
        %v1617 = vunpack.c.l.b16 %v1546
        %v1618 = vunpack.c.l.b16 %v1547
        %v1619 = vunpack.c.l.b16 %v1548
        %v1620 = vunpack.c.l.b16 %v1549
        %v1621 = vunpack.c.l.b16 %v1550
        %v1622 = vunpack.c.l.b16 %v1551
        %v1623 = vunpack.c.l.b16 %v1552
        %v1624 = vunpack.c.l.b16 %v1553
        %v1625 = vunpack.c.l.b16 %v1554
        %v1626 = vunpack.c.l.b16 %v1555
        %v1627 = vunpack.c.l.b16 %v1556
        %v1628 = vpack.c.b16 %v1597, %v1596
        %v1629 = vpack.c.b16 %v1599, %v1598
        %v1630 = vpack.c.b16 %v1601, %v1600
        %v1631 = vpack.c.b16 %v1603, %v1602
        %v1632 = vpack.c.b16 %v1605, %v1604
        %v1633 = vpack.c.b16 %v1607, %v1606
        %v1634 = vpack.c.b16 %v1609, %v1608
        %v1635 = vpack.c.b16 %v1611, %v1610
        %v1636 = vpack.c.b16 %v1613, %v1612
        %v1637 = vpack.c.b16 %v1615, %v1614
        %v1638 = vpack.c.b16 %v1617, %v1616
        %v1639 = vpack.c.b16 %v1619, %v1618
        %v1640 = vpack.c.b16 %v1621, %v1620
        %v1641 = vpack.c.b16 %v1623, %v1622
        %v1642 = vpack.c.b16 %v1625, %v1624
        %v1643 = vpack.c.b16 %v1627, %v1626
        %1660 = vmatprep.subr.bf16.mxu0 0
        %1661 = vmatpush1.bf16.msra.mxu0 %v1628
        %1662 = vmatprep.subr.bf16.mxu0 0
        %1663 = vmatpush1.bf16.msra.mxu0 %v1629
        %1664 = vmatprep.subr.bf16.mxu0 0
        %1665 = vmatpush1.bf16.msra.mxu0 %v1630
        %1666 = vmatprep.subr.bf16.mxu0 0
        %1667 = vmatpush1.bf16.msra.mxu0 %v1631
        %1668 = vmatprep.subr.bf16.mxu0 0
        %1669 = vmatpush1.bf16.msra.mxu0 %v1632
        %1670 = vmatprep.subr.bf16.mxu0 0
        %1671 = vmatpush1.bf16.msra.mxu0 %v1633
        %1672 = vmatprep.subr.bf16.mxu0 0
        %1673 = vmatpush1.bf16.msra.mxu0 %v1634
        %1674 = vmatprep.subr.bf16.mxu0 0
        %1675 = vmatpush1.bf16.msra.mxu0 %v1635
        %1676 = vmatprep.subr.bf16.mxu0 0
        %1677 = vmatpush1.bf16.msra.mxu0 %v1636
        %1678 = vmatprep.subr.bf16.mxu0 0
        %1679 = vmatpush1.bf16.msra.mxu0 %v1637
        %1680 = vmatprep.subr.bf16.mxu0 0
        %1681 = vmatpush1.bf16.msra.mxu0 %v1638
        %1682 = vmatprep.subr.bf16.mxu0 0
        %1683 = vmatpush1.bf16.msra.mxu0 %v1639
        %1684 = vmatprep.subr.bf16.mxu0 0
        %1685 = vmatpush1.bf16.msra.mxu0 %v1640
        %1686 = vmatprep.subr.bf16.mxu0 0
        %1687 = vmatpush1.bf16.msra.mxu0 %v1641
        %1688 = vmatprep.subr.bf16.mxu0 0
        %1689 = vmatpush1.bf16.msra.mxu0 %v1642
        %1690 = vmatprep.subr.bf16.mxu0 0
        %1691 = vmatpush1.bf16.msra.mxu0 %v1643
        %1692 = vmatprep.mubr.bf16.mxu0 %v1510
        %1693 = vmatmul.mubr.bf16.gmra.mrb[0].mxu0 %v1509
        %v1694 = vpop.f32.mrb[0].mxu0
        %v1695 = vadd.f32 %v1562, %v1694
        %v1696 = vpop.f32.mrb[0].mxu0
        %v1697 = vpop.f32.mrb[0].mxu0
        %v1698 = vadd.f32 %v1562, %v1697
        %v1699 = vpop.f32.mrb[0].mxu0
        %1700 = vmatprep.mubr.bf16.mxu0 %v1512
        %1701 = vmatmul.mubr.bf16.gmra.mrb[0].mxu0 %v1511
        %v1702 = vpop.f32.mrb[0].mxu0
        %v1703 = vadd.f32 %v1562, %v1702
        %v1704 = vpop.f32.mrb[0].mxu0
        %v1705 = vpop.f32.mrb[0].mxu0
        %v1706 = vadd.f32 %v1562, %v1705
        %v1707 = vpop.f32.mrb[0].mxu0
        %1708 = vmatprep.mubr.bf16.mxu0 %v1514
        %1709 = vmatmul.mubr.bf16.gmra.mrb[0].mxu0 %v1513
        %v1710 = vpop.f32.mrb[0].mxu0
        %v1711 = vadd.f32 %v1562, %v1710
        %v1712 = vpop.f32.mrb[0].mxu0
        %v1713 = vpop.f32.mrb[0].mxu0
        %v1714 = vadd.f32 %v1562, %v1713
        %v1715 = vpop.f32.mrb[0].mxu0
        %1716 = vmatprep.mubr.bf16.mxu0 %v1516
        %1717 = vmatmul.mubr.bf16.gmra.mrb[0].mxu0 %v1515
        %v1718 = vpop.f32.mrb[0].mxu0
        %v1719 = vadd.f32 %v1562, %v1718
        %v1720 = vpop.f32.mrb[0].mxu0
        %v1721 = vpop.f32.mrb[0].mxu0
        %v1722 = vadd.f32 %v1562, %v1721
        %v1723 = vpop.f32.mrb[0].mxu0
        %1724 = vmatprep.mubr.bf16.mxu0 %v1518
        %1725 = vmatmul.mubr.bf16.gmra.mrb[0].mxu0 %v1517
        %v1726 = vpop.f32.mrb[0].mxu0
        %v1727 = vadd.f32 %v1562, %v1726
        %v1728 = vpop.f32.mrb[0].mxu0
        %v1729 = vpop.f32.mrb[0].mxu0
        %v1730 = vadd.f32 %v1562, %v1729
        %v1731 = vpop.f32.mrb[0].mxu0
        %1732 = vmatprep.mubr.bf16.mxu0 %v1520
        %1733 = vmatmul.mubr.bf16.gmra.mrb[0].mxu0 %v1519
        %v1734 = vpop.f32.mrb[0].mxu0
        %v1735 = vadd.f32 %v1562, %v1734
        %v1736 = vpop.f32.mrb[0].mxu0
        %v1737 = vpop.f32.mrb[0].mxu0
        %v1738 = vadd.f32 %v1562, %v1737
        %v1739 = vpop.f32.mrb[0].mxu0
        %1740 = vmatprep.mubr.bf16.mxu0 %v1522
        %1741 = vmatmul.mubr.bf16.gmra.mrb[0].mxu0 %v1521
        %v1742 = vpop.f32.mrb[0].mxu0
        %v1743 = vadd.f32 %v1562, %v1742
        %v1744 = vpop.f32.mrb[0].mxu0
        %v1745 = vpop.f32.mrb[0].mxu0
        %v1746 = vadd.f32 %v1562, %v1745
        %v1747 = vpop.f32.mrb[0].mxu0
        %1748 = vmatprep.mubr.bf16.mxu0 %v1524
        %1749 = vmatmul.mubr.bf16.gmra.mrb[0].mxu0 %v1523
        %v1750 = vpop.f32.mrb[0].mxu0
        %v1751 = vadd.f32 %v1562, %v1750
        %v1752 = vpop.f32.mrb[0].mxu0
        %v1753 = vpop.f32.mrb[0].mxu0
        %v1754 = vadd.f32 %v1562, %v1753
        %v1755 = vpop.f32.mrb[0].mxu0
        %1756 = vdwg.mxu0
        %1757 = vst [vmem:[%s458] sm:$0xff] %v1695
        %1758 = vst [vmem:[%s458 + $0x8] sm:$0xff] %v1698
        %1759 = vst [vmem:[%s458 + $0x10] sm:$0xff] %v1703
        %1760 = vst [vmem:[%s458 + $0x18] sm:$0xff] %v1706
        %1761 = vst [vmem:[%s458 + $0x20] sm:$0xff] %v1711
        %1762 = vst [vmem:[%s458 + $0x28] sm:$0xff] %v1714
        %1763 = vst [vmem:[%s458 + $0x30] sm:$0xff] %v1719
        %1764 = vst [vmem:[%s458 + $0x38] sm:$0xff] %v1722
        %1765 = vst [vmem:[%s458 + $0x40] sm:$0xff] %v1727
        %1766 = vst [vmem:[%s458 + $0x48] sm:$0xff] %v1730
        %1767 = vst [vmem:[%s458 + $0x50] sm:$0xff] %v1735
        %1768 = vst [vmem:[%s458 + $0x58] sm:$0xff] %v1738
        %1769 = vst [vmem:[%s458 + $0x60] sm:$0xff] %v1743
        %1770 = vst [vmem:[%s458 + $0x68] sm:$0xff] %v1746
        %1771 = vst [vmem:[%s458 + $0x70] sm:$0xff] %v1751
        %1772 = vst [vmem:[%s458 + $0x78] sm:$0xff] %v1754
        %s1773 = sand.u32 %s232, 1
        %s1774 = scalar_lea.sflag [#allocation4], %s1773
        %s1775 = sand.u32 %s232, 1
        %s1776 = smul.addr %s1775, 128
        %s1777 = scalar_lea.vmem [#allocation17], %s1776
        // Predicated region
        $region93: #{tpu_custom_call.1} parent=55 // pred_check
          %p1778 = pneg %p242
        $region94: #{tpu_custom_call.1} parent=55 // pred_check_branch
          %1780 = sbr.rel (%p1778) target = $region96
        $region95: #{tpu_custom_call.1} parent=55 // pred_region
          %s1781 = smul.u32 16, %s30
          %s1783 = ssub.s32 2048, 2048
          %1784 = vsyncadd %s1774, %s1783
          %s1785 = smul.addr %s1781, 128
          %s1786 = scalar_lea.hbm %s9, %s1785
          %s1787 = sshll.u32 %s1777, 4
          %s1788 = int_to_ptr.vmem [resolvable:$true] %s1787
          %1793 = dma.vmem_to_hbm [thread:$0]  %s1788, 2048, %s1786, %s1774, 128, 128, 8
        $region96: #{tpu_custom_call.1} parent=55 // pred_fallthru
          _
      $region56: #{tpu_custom_call.1} parent=5 // pred_fallthru
        _
      %p1794 = scmp.le.s32.totalorder 2, %s25
      // Predicated region
      $region97: #{tpu_custom_call.1} parent=5 // pred_check
        %p1795 = pneg %p1794
      $region98: #{tpu_custom_call.1} parent=5 // pred_check_branch
        %1797 = sbr.rel (%p1795) target = $region100
      $region99: #{tpu_custom_call.1} parent=5 // pred_region
        %s1798 = ssub.s32 %s25, 2
        // Predicated region
        $region101: #{tpu_custom_call.1} parent=99 // pred_check
          %p1799 = pneg %p248
        $region102: #{tpu_custom_call.1} parent=99 // pred_check_branch
          %1801 = sbr.rel (%p1799) target = $region104
        $region103: #{tpu_custom_call.1} parent=99 // pred_region
          %s1802 = sand.u32 %s233, 1
          %s1803 = scalar_lea.sflag [#allocation4], %s1802
          %s1804 = sand.u32 %s233, 1
          %s1805 = smul.addr %s1804, 128
          %s1806 = scalar_lea.vmem [#allocation17], %s1805
          %1807 = dma.done %s1803, 2048
        $region104: #{tpu_custom_call.1} parent=99 // pred_fallthru
          _
      $region100: #{tpu_custom_call.1} parent=5 // pred_fallthru
        _
    $region6: #{tpu_custom_call.1} parent=1 // loop_footer
      %s29 = sadd.s32 1, %s25
    $region7: #{tpu_custom_call.1} parent=1 // loop_footer_branch
      %24 = sbr.rel target = $region3
    $region8: #{tpu_custom_call.1} parent=1 // loop_exit
      _
    %1808 = vsyncpa [#allocation3], 1
    %s1809 = scalar_lea.sflag [#allocation3], 1
    %1810 = vsyncpa %s1809, 1
    %1811 = vsyncpa [#allocation6], 1
    %1812 = vsyncpa [#allocation9], 1
    %1813 = vsyncpa [#allocation12], 1
    %1814 = vsyncpa [#allocation15], 1
    %1815 = vsyncpa [#allocation4], 1
    %s1816 = scalar_lea.sflag [#allocation4], 1
    %1817 = vsyncpa %s1816, 1

</llo_original>
